<compile_context>
chip_gen: v7x
topology: tpu7x:2x2x1
jax: 0.10.0
libtpu: 0.0.40
codegen_flags: <defaults>
</compile_context>

<pallas_src>
import jax
import jax.numpy as jnp
from jax import lax
from jax.experimental import pallas as pl
from jax.experimental.pallas import tpu as pltpu

EPS = 1e-5  # PyTorch BatchNorm3d default


def _toeplitz_weight(w, W, C):
    """(Cout, Cin, 3, 3, 3) PyTorch conv weight -> (9*Wp*C, W*C) block-Toeplitz
    matrix so the whole 3x3x3 conv becomes a single matmul over the im2col-by-
    (kd,kh) patch with lanes = (w, c)."""
    Wp = W + 2
    # (kd, kh, kw, Cin, Cout)
    wt = jnp.transpose(w, (2, 3, 4, 1, 0)).astype(jnp.float32)
    wprime = jnp.arange(Wp)[:, None]            # padded input w'
    wout = jnp.arange(W)[None, :]               # output w
    kw = wprime - wout                          # (Wp, W); tap index
    valid = ((kw >= 0) & (kw <= 2)).astype(jnp.float32)
    kw_c = jnp.clip(kw, 0, 2)
    g = wt[:, :, kw_c, :, :]                    # (3, 3, Wp, W, Cin, Cout)
    g = g * valid[None, None, :, :, None, None]
    g = jnp.transpose(g, (0, 1, 2, 4, 3, 5))    # (kd, kh, w', Cin, w, Cout)
    return g.reshape(9 * Wp * C, W * C)


def _make_kernel(N, D, H, W, C):
    Dp, Hp, Wp = D + 2, H + 2, W + 2
    WC, WPC = W * C, Wp * C
    M = N * D * H
    KT = 9 * WPC
    inv_cnt = 1.0 / float(M * W)   # BN reduction count = N*D*H*W

    def kernel(x_ref, wt1_ref, wt2_ref, bn_ref, csum_ref, o_ref, pad_ref):
        # x_ref   : (N, D, H, W*C)   unpadded input, lanes = (w, c)
        # wt*_ref : (9*Wp*C, W*C)    block-Toeplitz conv weights
        # bn_ref  : (4, W*C)         [gamma1, beta1, gamma2, beta2] tiled over w
        # csum_ref: (W*C, W*C)       channel-sum matrix (sum over w, keep c)
        # o_ref   : (N*D*H, W*C)     output, lanes = (w, c)
        # pad_ref : (N, Dp, Hp, Wp*C) persistent zero-halo padded scratch
        x = x_ref[...]                                  # (N, D, H, WC) f32
        A = csum_ref[...]                               # (WC, WC)

        # Zero only the D/H halo faces, once; interior is overwritten per conv
        # and the W halo is written as zero lanes of the stored value.
        pad_ref[:, 0:1, :, :] = jnp.zeros((N, 1, Hp, WPC), jnp.float32)
        pad_ref[:, Dp - 1:Dp, :, :] = jnp.zeros((N, 1, Hp, WPC), jnp.float32)
        pad_ref[:, :, 0:1, :] = jnp.zeros((N, Dp, 1, WPC), jnp.float32)
        pad_ref[:, :, Hp - 1:Hp, :] = jnp.zeros((N, Dp, 1, WPC), jnp.float32)

        wzero = jnp.zeros((N, D, H, C), jnp.float32)

        def store_interior(v):                          # v: (N, D, H, WC)
            row = jnp.concatenate([wzero, v, wzero], axis=-1)   # (N, D, H, WPC)
            pad_ref[:, 1:1 + D, 1:1 + H, :] = row

        def conv(wt_ref):
            # im2col over the 9 (kd, kh) taps only (kw lives in the Toeplitz
            # weight); each tap slice keeps the lane axis intact.
            cols = [pad_ref[:, kd:kd + D, kh:kh + H, :]
                    for kd in range(3) for kh in range(3)]
            patch = jnp.concatenate(cols, axis=-1).reshape(M, KT)
            return jnp.dot(patch, wt_ref[...],
                           preferred_element_type=jnp.float32)      # (M, WC)

        def bn_relu(y, g, b, relu):
            # one-pass training-mode BN: per-channel sum / sum-of-squares
            s = jnp.sum(y, axis=0, keepdims=True)                   # (1, WC)
            ss = jnp.sum(y * y, axis=0, keepdims=True)               # (1, WC)
            mean = jnp.dot(s, A, preferred_element_type=jnp.float32) * inv_cnt
            ex2 = jnp.dot(ss, A, preferred_element_type=jnp.float32) * inv_cnt
            var = ex2 - mean * mean
            out = (y - mean) * (lax.rsqrt(var + EPS) * g) + b
            return jnp.maximum(out, 0.0) if relu else out

        # conv1 -> bn1 -> relu
        store_interior(x)
        y1 = bn_relu(conv(wt1_ref), bn_ref[0:1], bn_ref[1:2], relu=True)

        # conv2 -> bn2 (reuse the same padded scratch; halo still zero)
        store_interior(y1.reshape(N, D, H, WC))
        y2 = bn_relu(conv(wt2_ref), bn_ref[2:3], bn_ref[3:4], relu=False)

        # + residual (straight from the unpadded input) -> relu
        o_ref[...] = jnp.maximum(y2 + x.reshape(M, WC), 0.0)

    return kernel


def basic_block_forward(x_ncdhw, w1, w2, gamma1, beta1, gamma2, beta2):
    """Forward pass of BasicBlock(inplanes=planes, stride=1, downsample=None).

    x_ncdhw : (N, C, D, H, W)  -- PyTorch layout
    w1, w2  : (C, C, 3, 3, 3)  -- PyTorch Conv3d weight layout (Cout, Cin, kd, kh, kw)
    gamma*, beta* : (C,)       -- BatchNorm3d affine parameters
    returns : (N, C, D, H, W)
    """
    N, C, D, H, W = x_ncdhw.shape
    Dp, Hp, Wp = D + 2, H + 2, W + 2
    WC, WPC = W * C, Wp * C
    M = N * D * H

    # NCDHW -> NDHWC -> (N, D, H, W*C); no HBM padding (halo handled in-kernel)
    x = jnp.transpose(x_ncdhw, (0, 2, 3, 4, 1)).astype(jnp.float32)
    x = x.reshape(N, D, H, WC)

    wt1 = _toeplitz_weight(w1, W, C)                     # (9*Wp*C, W*C)
    wt2 = _toeplitz_weight(w2, W, C)

    # BN affine params tiled to the (w, c) lane layout.
    bn = jnp.stack([jnp.tile(gamma1.astype(jnp.float32), W),
                    jnp.tile(beta1.astype(jnp.float32), W),
                    jnp.tile(gamma2.astype(jnp.float32), W),
                    jnp.tile(beta2.astype(jnp.float32), W)])          # (4, WC)

    # Channel-sum matrix: (colsum @ csum)[w, c] = per-channel total, broadcast over w.
    csum = jnp.tile(jnp.eye(C, dtype=jnp.float32), (W, W))            # (WC, WC)

    out_flat = pl.pallas_call(
        _make_kernel(N, D, H, W, C),
        out_shape=jax.ShapeDtypeStruct((M, WC), jnp.float32),
        in_specs=[pl.BlockSpec(memory_space=pltpu.MemorySpace.VMEM)] * 5,
        out_specs=pl.BlockSpec(memory_space=pltpu.MemorySpace.VMEM),
        scratch_shapes=[pltpu.VMEM((N, Dp, Hp, WPC), jnp.float32)],
        compiler_params=pltpu.CompilerParams(vmem_limit_bytes=32 * 1024 * 1024),
    )(x, wt1, wt2, bn, csum)

    out = out_flat.reshape(N, D, H, W, C)
    return jnp.transpose(out, (0, 4, 1, 2, 3))           # back to NCDHW


def _reference(x_ncdhw, w1, w2, gamma1, beta1, gamma2, beta2):
    """Pure-JAX reference with identical semantics (for verification)."""
    x = jnp.transpose(x_ncdhw, (0, 2, 3, 4, 1)).astype(jnp.float32)

    def conv(x, w):
        w_dhwio = jnp.transpose(w, (2, 3, 4, 1, 0)).astype(jnp.float32)
        return lax.conv_general_dilated(
            x, w_dhwio, window_strides=(1, 1, 1), padding='SAME',
            dimension_numbers=('NDHWC', 'DHWIO', 'NDHWC'),
            precision=lax.Precision.HIGHEST)

    def bn(y, g, b):
        mean = jnp.mean(y, axis=(0, 1, 2, 3), keepdims=True)
        var = jnp.mean((y - mean) ** 2, axis=(0, 1, 2, 3), keepdims=True)
        return (y - mean) * lax.rsqrt(var + EPS) * g + b

    y = jax.nn.relu(bn(conv(x, w1), gamma1, beta1))
    y = bn(conv(y, w2), gamma2, beta2)
    y = jax.nn.relu(y + x)
    return jnp.transpose(y, (0, 4, 1, 2, 3))


if __name__ == "__main__":
    key = jax.random.PRNGKey(0)
    kx, kw1, kw2, kg1, kb1, kg2, kb2 = jax.random.split(key, 7)

    # Small shapes consistent with BasicBlock(inplanes=8, planes=8, stride=1)
    N, C, D, H, W = 2, 8, 4, 8, 8
    x = jax.random.normal(kx, (N, C, D, H, W), jnp.float32)

    # conv3x3x3 weights (bias=False), deterministic synthetic init
    w1 = 0.1 * jax.random.normal(kw1, (C, C, 3, 3, 3), jnp.float32)
    w2 = 0.1 * jax.random.normal(kw2, (C, C, 3, 3, 3), jnp.float32)

    # BatchNorm3d affine params (non-trivial, deterministic)
    gamma1 = 1.0 + 0.1 * jax.random.normal(kg1, (C,), jnp.float32)
    beta1 = 0.1 * jax.random.normal(kb1, (C,), jnp.float32)
    gamma2 = 1.0 + 0.1 * jax.random.normal(kg2, (C,), jnp.float32)
    beta2 = 0.1 * jax.random.normal(kb2, (C,), jnp.float32)

    out = basic_block_forward(x, w1, w2, gamma1, beta1, gamma2, beta2)
    out = jax.block_until_ready(out)

    ref = _reference(x, w1, w2, gamma1, beta1, gamma2, beta2)
    assert out.shape == (N, C, D, H, W), out.shape
    assert jnp.allclose(out, ref, rtol=2e-3, atol=2e-3), (
        float(jnp.max(jnp.abs(out - ref))))

    print("KERNEL_OK")
</pallas_src>

<mosaic_0001>
module attributes {stable_mosaic.version = 11 : i64} {
  func.func @kernel(%arg0: memref<2x4x8x64xf32, #tpu.memory_space<vmem>>, %arg1: memref<720x64xf32, #tpu.memory_space<vmem>>, %arg2: memref<720x64xf32, #tpu.memory_space<vmem>>, %arg3: memref<4x64xf32, #tpu.memory_space<vmem>>, %arg4: memref<64x64xf32, #tpu.memory_space<vmem>>, %arg5: memref<64x64xf32, #tpu.memory_space<vmem>>, %arg6: memref<2x6x10x80xf32, #tpu.memory_space<vmem>>) attributes {dimension_semantics = [], scalar_prefetch = 0 : i64, scratch_operands = 1 : i64, tpu.core_type = #tpu.core_type<tc>} {
    %c0 = arith.constant 0 : index
    %c0_0 = arith.constant 0 : index
    %c0_1 = arith.constant 0 : index
    %c0_2 = arith.constant 0 : index
    %0 = vector.load %arg0[%c0, %c0_0, %c0_1, %c0_2] : memref<2x4x8x64xf32, #tpu.memory_space<vmem>>, vector<2x4x8x64xf32>
    %c0_3 = arith.constant 0 : index
    %c0_4 = arith.constant 0 : index
    %1 = vector.load %arg4[%c0_3, %c0_4] : memref<64x64xf32, #tpu.memory_space<vmem>>, vector<64x64xf32>
    %cst = arith.constant 0.000000e+00 : f32
    %2 = vector.broadcast %cst : f32 to vector<2x1x10x80xf32>
    %c0_5 = arith.constant 0 : index
    %c0_6 = arith.constant 0 : index
    %c0_7 = arith.constant 0 : index
    %c0_8 = arith.constant 0 : index
    %3 = vector.load %arg6[%c0_5, %c0_6, %c0_7, %c0_8] : memref<2x6x10x80xf32, #tpu.memory_space<vmem>>, vector<2x1x10x80xf32>
    tpu.vector_store %arg6[%c0_5, %c0_6, %c0_7, %c0_8], %2 {strides = array<i32>} : memref<2x6x10x80xf32, #tpu.memory_space<vmem>>, vector<2x1x10x80xf32>,
    %cst_9 = arith.constant 0.000000e+00 : f32
    %4 = vector.broadcast %cst_9 : f32 to vector<2x1x10x80xf32>
    %c0_10 = arith.constant 0 : index
    %c5 = arith.constant 5 : index
    %c0_11 = arith.constant 0 : index
    %c0_12 = arith.constant 0 : index
    %5 = vector.load %arg6[%c0_10, %c5, %c0_11, %c0_12] : memref<2x6x10x80xf32, #tpu.memory_space<vmem>>, vector<2x1x10x80xf32>
    tpu.vector_store %arg6[%c0_10, %c5, %c0_11, %c0_12], %4 {strides = array<i32>} : memref<2x6x10x80xf32, #tpu.memory_space<vmem>>, vector<2x1x10x80xf32>,
    %cst_13 = arith.constant 0.000000e+00 : f32
    %6 = vector.broadcast %cst_13 : f32 to vector<2x6x1x80xf32>
    %c0_14 = arith.constant 0 : index
    %c0_15 = arith.constant 0 : index
    %c0_16 = arith.constant 0 : index
    %c0_17 = arith.constant 0 : index
    %7 = vector.load %arg6[%c0_14, %c0_15, %c0_16, %c0_17] : memref<2x6x10x80xf32, #tpu.memory_space<vmem>>, vector<2x6x1x80xf32>
    tpu.vector_store %arg6[%c0_14, %c0_15, %c0_16, %c0_17], %6 {strides = array<i32>} : memref<2x6x10x80xf32, #tpu.memory_space<vmem>>, vector<2x6x1x80xf32>,
    %cst_18 = arith.constant 0.000000e+00 : f32
    %8 = vector.broadcast %cst_18 : f32 to vector<2x6x1x80xf32>
    %c0_19 = arith.constant 0 : index
    %c0_20 = arith.constant 0 : index
    %c9 = arith.constant 9 : index
    %c0_21 = arith.constant 0 : index
    %9 = vector.load %arg6[%c0_19, %c0_20, %c9, %c0_21] : memref<2x6x10x80xf32, #tpu.memory_space<vmem>>, vector<2x6x1x80xf32>
    tpu.vector_store %arg6[%c0_19, %c0_20, %c9, %c0_21], %8 {strides = array<i32>} : memref<2x6x10x80xf32, #tpu.memory_space<vmem>>, vector<2x6x1x80xf32>,
    %cst_22 = arith.constant 0.000000e+00 : f32
    %10 = vector.broadcast %cst_22 : f32 to vector<2x4x8x8xf32>
    %11 = tpu.concatenate %10, %0, %10 in 3 : vector<2x4x8x8xf32>, vector<2x4x8x64xf32>, vector<2x4x8x8xf32> -> vector<2x4x8x80xf32>
    %c0_23 = arith.constant 0 : index
    %c1 = arith.constant 1 : index
    %c1_24 = arith.constant 1 : index
    %c0_25 = arith.constant 0 : index
    %12 = vector.load %arg6[%c0_23, %c1, %c1_24, %c0_25] : memref<2x6x10x80xf32, #tpu.memory_space<vmem>>, vector<2x4x8x80xf32>
    tpu.vector_store %arg6[%c0_23, %c1, %c1_24, %c0_25], %11 {strides = array<i32>} : memref<2x6x10x80xf32, #tpu.memory_space<vmem>>, vector<2x4x8x80xf32>,
    %c0_26 = arith.constant 0 : index
    %c0_27 = arith.constant 0 : index
    %c0_28 = arith.constant 0 : index
    %c0_29 = arith.constant 0 : index
    %13 = vector.load %arg6[%c0_26, %c0_27, %c0_28, %c0_29] : memref<2x6x10x80xf32, #tpu.memory_space<vmem>>, vector<2x4x8x80xf32>
    %c0_30 = arith.constant 0 : index
    %c0_31 = arith.constant 0 : index
    %c1_32 = arith.constant 1 : index
    %c0_33 = arith.constant 0 : index
    %14 = vector.load %arg6[%c0_30, %c0_31, %c1_32, %c0_33] : memref<2x6x10x80xf32, #tpu.memory_space<vmem>>, vector<2x4x8x80xf32>
    %c0_34 = arith.constant 0 : index
    %c0_35 = arith.constant 0 : index
    %c2 = arith.constant 2 : index
    %c0_36 = arith.constant 0 : index
    %15 = vector.load %arg6[%c0_34, %c0_35, %c2, %c0_36] : memref<2x6x10x80xf32, #tpu.memory_space<vmem>>, vector<2x4x8x80xf32>
    %c0_37 = arith.constant 0 : index
    %c1_38 = arith.constant 1 : index
    %c0_39 = arith.constant 0 : index
    %c0_40 = arith.constant 0 : index
    %16 = vector.load %arg6[%c0_37, %c1_38, %c0_39, %c0_40] : memref<2x6x10x80xf32, #tpu.memory_space<vmem>>, vector<2x4x8x80xf32>
    %c0_41 = arith.constant 0 : index
    %c1_42 = arith.constant 1 : index
    %c1_43 = arith.constant 1 : index
    %c0_44 = arith.constant 0 : index
    %17 = vector.load %arg6[%c0_41, %c1_42, %c1_43, %c0_44] : memref<2x6x10x80xf32, #tpu.memory_space<vmem>>, vector<2x4x8x80xf32>
    %c0_45 = arith.constant 0 : index
    %c1_46 = arith.constant 1 : index
    %c2_47 = arith.constant 2 : index
    %c0_48 = arith.constant 0 : index
    %18 = vector.load %arg6[%c0_45, %c1_46, %c2_47, %c0_48] : memref<2x6x10x80xf32, #tpu.memory_space<vmem>>, vector<2x4x8x80xf32>
    %c0_49 = arith.constant 0 : index
    %c2_50 = arith.constant 2 : index
    %c0_51 = arith.constant 0 : index
    %c0_52 = arith.constant 0 : index
    %19 = vector.load %arg6[%c0_49, %c2_50, %c0_51, %c0_52] : memref<2x6x10x80xf32, #tpu.memory_space<vmem>>, vector<2x4x8x80xf32>
    %c0_53 = arith.constant 0 : index
    %c2_54 = arith.constant 2 : index
    %c1_55 = arith.constant 1 : index
    %c0_56 = arith.constant 0 : index
    %20 = vector.load %arg6[%c0_53, %c2_54, %c1_55, %c0_56] : memref<2x6x10x80xf32, #tpu.memory_space<vmem>>, vector<2x4x8x80xf32>
    %c0_57 = arith.constant 0 : index
    %c2_58 = arith.constant 2 : index
    %c2_59 = arith.constant 2 : index
    %c0_60 = arith.constant 0 : index
    %21 = vector.load %arg6[%c0_57, %c2_58, %c2_59, %c0_60] : memref<2x6x10x80xf32, #tpu.memory_space<vmem>>, vector<2x4x8x80xf32>
    %22 = tpu.concatenate %13, %14, %15, %16, %17, %18, %19, %20, %21 in 3 : vector<2x4x8x80xf32>, vector<2x4x8x80xf32>, vector<2x4x8x80xf32>, vector<2x4x8x80xf32>, vector<2x4x8x80xf32>, vector<2x4x8x80xf32>, vector<2x4x8x80xf32>, vector<2x4x8x80xf32>, vector<2x4x8x80xf32> -> vector<2x4x8x720xf32>
    %23 = vector.shape_cast %22 : vector<2x4x8x720xf32> to vector<64x720xf32>
    %c0_61 = arith.constant 0 : index
    %c0_62 = arith.constant 0 : index
    %24 = vector.load %arg1[%c0_61, %c0_62] : memref<720x64xf32, #tpu.memory_space<vmem>>, vector<720x64xf32>
    %cst_63 = arith.constant dense<0.000000e+00> : vector<64x64xf32>
    %25 = tpu.matmul %23, %24, %cst_63 {dimension_numbers = #tpu.dot_dimension_numbers<[1], [0], [0], [1], [0, 0, 1, 1], [], []>} : vector<64x720xf32>, vector<720x64xf32>, vector<64x64xf32> -> vector<64x64xf32>
    %c0_64 = arith.constant 0 : index
    %c0_65 = arith.constant 0 : index
    %26 = vector.load %arg3[%c0_64, %c0_65] : memref<4x64xf32, #tpu.memory_space<vmem>>, vector<1x64xf32>
    %c1_66 = arith.constant 1 : index
    %c0_67 = arith.constant 0 : index
    %27 = vector.load %arg3[%c1_66, %c0_67] : memref<4x64xf32, #tpu.memory_space<vmem>>, vector<1x64xf32>
    %cst_68 = arith.constant dense<0.000000e+00> : vector<64xf32>
    %28 = vector.multi_reduction <add>, %25, %cst_68 [0] : vector<64x64xf32> to vector<64xf32>
    %29 = vector.shape_cast %28 : vector<64xf32> to vector<1x64xf32>
    %30 = arith.mulf %25, %25 : vector<64x64xf32>
    %cst_69 = arith.constant dense<0.000000e+00> : vector<64xf32>
    %31 = vector.multi_reduction <add>, %30, %cst_69 [0] : vector<64x64xf32> to vector<64xf32>
    %32 = vector.shape_cast %31 : vector<64xf32> to vector<1x64xf32>
    %cst_70 = arith.constant dense<0.000000e+00> : vector<1x64xf32>
    %33 = tpu.matmul %29, %1, %cst_70 {dimension_numbers = #tpu.dot_dimension_numbers<[1], [0], [0], [1], [0, 0, 1, 1], [], []>} : vector<1x64xf32>, vector<64x64xf32>, vector<1x64xf32> -> vector<1x64xf32>
    %cst_71 = arith.constant 0.001953125 : f32
    %34 = vector.broadcast %cst_71 : f32 to vector<1x64xf32>
    %35 = arith.mulf %33, %34 : vector<1x64xf32>
    %cst_72 = arith.constant dense<0.000000e+00> : vector<1x64xf32>
    %36 = tpu.matmul %32, %1, %cst_72 {dimension_numbers = #tpu.dot_dimension_numbers<[1], [0], [0], [1], [0, 0, 1, 1], [], []>} : vector<1x64xf32>, vector<64x64xf32>, vector<1x64xf32> -> vector<1x64xf32>
    %cst_73 = arith.constant 0.001953125 : f32
    %37 = vector.broadcast %cst_73 : f32 to vector<1x64xf32>
    %38 = arith.mulf %36, %37 : vector<1x64xf32>
    %39 = arith.mulf %35, %35 : vector<1x64xf32>
    %40 = arith.subf %38, %39 : vector<1x64xf32>
    %41 = vector.broadcast %35 : vector<1x64xf32> to vector<64x64xf32>
    %42 = arith.subf %25, %41 : vector<64x64xf32>
    %cst_74 = arith.constant 9.99999974E-6 : f32
    %43 = vector.broadcast %cst_74 : f32 to vector<1x64xf32>
    %44 = arith.addf %40, %43 : vector<1x64xf32>
    %45 = math.rsqrt %44 : vector<1x64xf32>
    %46 = arith.mulf %45, %26 : vector<1x64xf32>
    %47 = vector.broadcast %46 : vector<1x64xf32> to vector<64x64xf32>
    %48 = arith.mulf %42, %47 : vector<64x64xf32>
    %49 = vector.broadcast %27 : vector<1x64xf32> to vector<64x64xf32>
    %50 = arith.addf %48, %49 : vector<64x64xf32>
    %cst_75 = arith.constant 0.000000e+00 : f32
    %51 = vector.broadcast %cst_75 : f32 to vector<64x64xf32>
    %52 = arith.maximumf %50, %51 : vector<64x64xf32>
    %53 = vector.shape_cast %52 : vector<64x64xf32> to vector<2x4x8x64xf32>
    %54 = tpu.concatenate %10, %53, %10 in 3 : vector<2x4x8x8xf32>, vector<2x4x8x64xf32>, vector<2x4x8x8xf32> -> vector<2x4x8x80xf32>
    %c0_76 = arith.constant 0 : index
    %c1_77 = arith.constant 1 : index
    %c1_78 = arith.constant 1 : index
    %c0_79 = arith.constant 0 : index
    %55 = vector.load %arg6[%c0_76, %c1_77, %c1_78, %c0_79] : memref<2x6x10x80xf32, #tpu.memory_space<vmem>>, vector<2x4x8x80xf32>
    tpu.vector_store %arg6[%c0_76, %c1_77, %c1_78, %c0_79], %54 {strides = array<i32>} : memref<2x6x10x80xf32, #tpu.memory_space<vmem>>, vector<2x4x8x80xf32>,
    %c0_80 = arith.constant 0 : index
    %c0_81 = arith.constant 0 : index
    %c0_82 = arith.constant 0 : index
    %c0_83 = arith.constant 0 : index
    %56 = vector.load %arg6[%c0_80, %c0_81, %c0_82, %c0_83] : memref<2x6x10x80xf32, #tpu.memory_space<vmem>>, vector<2x4x8x80xf32>
    %c0_84 = arith.constant 0 : index
    %c0_85 = arith.constant 0 : index
    %c1_86 = arith.constant 1 : index
    %c0_87 = arith.constant 0 : index
    %57 = vector.load %arg6[%c0_84, %c0_85, %c1_86, %c0_87] : memref<2x6x10x80xf32, #tpu.memory_space<vmem>>, vector<2x4x8x80xf32>
    %c0_88 = arith.constant 0 : index
    %c0_89 = arith.constant 0 : index
    %c2_90 = arith.constant 2 : index
    %c0_91 = arith.constant 0 : index
    %58 = vector.load %arg6[%c0_88, %c0_89, %c2_90, %c0_91] : memref<2x6x10x80xf32, #tpu.memory_space<vmem>>, vector<2x4x8x80xf32>
    %c0_92 = arith.constant 0 : index
    %c1_93 = arith.constant 1 : index
    %c0_94 = arith.constant 0 : index
    %c0_95 = arith.constant 0 : index
    %59 = vector.load %arg6[%c0_92, %c1_93, %c0_94, %c0_95] : memref<2x6x10x80xf32, #tpu.memory_space<vmem>>, vector<2x4x8x80xf32>
    %c0_96 = arith.constant 0 : index
    %c1_97 = arith.constant 1 : index
    %c1_98 = arith.constant 1 : index
    %c0_99 = arith.constant 0 : index
    %60 = vector.load %arg6[%c0_96, %c1_97, %c1_98, %c0_99] : memref<2x6x10x80xf32, #tpu.memory_space<vmem>>, vector<2x4x8x80xf32>
    %c0_100 = arith.constant 0 : index
    %c1_101 = arith.constant 1 : index
    %c2_102 = arith.constant 2 : index
    %c0_103 = arith.constant 0 : index
    %61 = vector.load %arg6[%c0_100, %c1_101, %c2_102, %c0_103] : memref<2x6x10x80xf32, #tpu.memory_space<vmem>>, vector<2x4x8x80xf32>
    %c0_104 = arith.constant 0 : index
    %c2_105 = arith.constant 2 : index
    %c0_106 = arith.constant 0 : index
    %c0_107 = arith.constant 0 : index
    %62 = vector.load %arg6[%c0_104, %c2_105, %c0_106, %c0_107] : memref<2x6x10x80xf32, #tpu.memory_space<vmem>>, vector<2x4x8x80xf32>
    %c0_108 = arith.constant 0 : index
    %c2_109 = arith.constant 2 : index
    %c1_110 = arith.constant 1 : index
    %c0_111 = arith.constant 0 : index
    %63 = vector.load %arg6[%c0_108, %c2_109, %c1_110, %c0_111] : memref<2x6x10x80xf32, #tpu.memory_space<vmem>>, vector<2x4x8x80xf32>
    %c0_112 = arith.constant 0 : index
    %c2_113 = arith.constant 2 : index
    %c2_114 = arith.constant 2 : index
    %c0_115 = arith.constant 0 : index
    %64 = vector.load %arg6[%c0_112, %c2_113, %c2_114, %c0_115] : memref<2x6x10x80xf32, #tpu.memory_space<vmem>>, vector<2x4x8x80xf32>
    %65 = tpu.concatenate %56, %57, %58, %59, %60, %61, %62, %63, %64 in 3 : vector<2x4x8x80xf32>, vector<2x4x8x80xf32>, vector<2x4x8x80xf32>, vector<2x4x8x80xf32>, vector<2x4x8x80xf32>, vector<2x4x8x80xf32>, vector<2x4x8x80xf32>, vector<2x4x8x80xf32>, vector<2x4x8x80xf32> -> vector<2x4x8x720xf32>
    %66 = vector.shape_cast %65 : vector<2x4x8x720xf32> to vector<64x720xf32>
    %c0_116 = arith.constant 0 : index
    %c0_117 = arith.constant 0 : index
    %67 = vector.load %arg2[%c0_116, %c0_117] : memref<720x64xf32, #tpu.memory_space<vmem>>, vector<720x64xf32>
    %cst_118 = arith.constant dense<0.000000e+00> : vector<64x64xf32>
    %68 = tpu.matmul %66, %67, %cst_118 {dimension_numbers = #tpu.dot_dimension_numbers<[1], [0], [0], [1], [0, 0, 1, 1], [], []>} : vector<64x720xf32>, vector<720x64xf32>, vector<64x64xf32> -> vector<64x64xf32>
    %c2_119 = arith.constant 2 : index
    %c0_120 = arith.constant 0 : index
    %69 = vector.load %arg3[%c2_119, %c0_120] : memref<4x64xf32, #tpu.memory_space<vmem>>, vector<1x64xf32>
    %c3 = arith.constant 3 : index
    %c0_121 = arith.constant 0 : index
    %70 = vector.load %arg3[%c3, %c0_121] : memref<4x64xf32, #tpu.memory_space<vmem>>, vector<1x64xf32>
    %cst_122 = arith.constant dense<0.000000e+00> : vector<64xf32>
    %71 = vector.multi_reduction <add>, %68, %cst_122 [0] : vector<64x64xf32> to vector<64xf32>
    %72 = vector.shape_cast %71 : vector<64xf32> to vector<1x64xf32>
    %73 = arith.mulf %68, %68 : vector<64x64xf32>
    %cst_123 = arith.constant dense<0.000000e+00> : vector<64xf32>
    %74 = vector.multi_reduction <add>, %73, %cst_123 [0] : vector<64x64xf32> to vector<64xf32>
    %75 = vector.shape_cast %74 : vector<64xf32> to vector<1x64xf32>
    %cst_124 = arith.constant dense<0.000000e+00> : vector<1x64xf32>
    %76 = tpu.matmul %72, %1, %cst_124 {dimension_numbers = #tpu.dot_dimension_numbers<[1], [0], [0], [1], [0, 0, 1, 1], [], []>} : vector<1x64xf32>, vector<64x64xf32>, vector<1x64xf32> -> vector<1x64xf32>
    %cst_125 = arith.constant 0.001953125 : f32
    %77 = vector.broadcast %cst_125 : f32 to vector<1x64xf32>
    %78 = arith.mulf %76, %77 : vector<1x64xf32>
    %cst_126 = arith.constant dense<0.000000e+00> : vector<1x64xf32>
    %79 = tpu.matmul %75, %1, %cst_126 {dimension_numbers = #tpu.dot_dimension_numbers<[1], [0], [0], [1], [0, 0, 1, 1], [], []>} : vector<1x64xf32>, vector<64x64xf32>, vector<1x64xf32> -> vector<1x64xf32>
    %cst_127 = arith.constant 0.001953125 : f32
    %80 = vector.broadcast %cst_127 : f32 to vector<1x64xf32>
    %81 = arith.mulf %79, %80 : vector<1x64xf32>
    %82 = arith.mulf %78, %78 : vector<1x64xf32>
    %83 = arith.subf %81, %82 : vector<1x64xf32>
    %84 = vector.broadcast %78 : vector<1x64xf32> to vector<64x64xf32>
    %85 = arith.subf %68, %84 : vector<64x64xf32>
    %cst_128 = arith.constant 9.99999974E-6 : f32
    %86 = vector.broadcast %cst_128 : f32 to vector<1x64xf32>
    %87 = arith.addf %83, %86 : vector<1x64xf32>
    %88 = math.rsqrt %87 : vector<1x64xf32>
    %89 = arith.mulf %88, %69 : vector<1x64xf32>
    %90 = vector.broadcast %89 : vector<1x64xf32> to vector<64x64xf32>
    %91 = arith.mulf %85, %90 : vector<64x64xf32>
    %92 = vector.broadcast %70 : vector<1x64xf32> to vector<64x64xf32>
    %93 = arith.addf %91, %92 : vector<64x64xf32>
    %94 = vector.shape_cast %0 : vector<2x4x8x64xf32> to vector<64x64xf32>
    %95 = arith.addf %93, %94 : vector<64x64xf32>
    %cst_129 = arith.constant 0.000000e+00 : f32
    %96 = vector.broadcast %cst_129 : f32 to vector<64x64xf32>
    %97 = arith.maximumf %95, %96 : vector<64x64xf32>
    %c0_130 = arith.constant 0 : index
    %c0_131 = arith.constant 0 : index
    %98 = vector.load %arg5[%c0_130, %c0_131] : memref<64x64xf32, #tpu.memory_space<vmem>>, vector<64x64xf32>
    tpu.vector_store %arg5[%c0_130, %c0_131], %97 {strides = array<i32>} : memref<64x64xf32, #tpu.memory_space<vmem>>, vector<64x64xf32>,
    return
  }
}

</mosaic_0001>

<llo_original>
// kernel: tpu_custom_call.1
$region0: #{tpu_custom_call.1}
  #allocation0 [shape = 'u32[]', space=smem, size = 0x4, offset = 0x4, fixed_abs, tag = 'smem constant byte address 0x4 - core index']
  #allocation1 [shape = 'u32[144,128]{1,0:T(1,128)}', space=vmem, size = 0x12000, scoped, tag = 'internal scratch']
  #allocation2 [shape = 'f32[2,6,10,80]{3,2,1,0:T(8,128)}', space=vmem, size = 0x18000, scoped, tag = 'scratch operand']
  %s0 = inlined_call_operand.vmem [shape: f32[2,4,8,64], index: 0, kind: input, shape index: {}]
  %s1 = inlined_call_operand.vmem [shape: f32[720,64], index: 1, kind: input, shape index: {}]
  %s2 = inlined_call_operand.vmem [shape: f32[720,64], index: 2, kind: input, shape index: {}]
  %s3 = inlined_call_operand.vmem [shape: f32[4,64], index: 3, kind: input, shape index: {}]
  %s4 = inlined_call_operand.vmem [shape: f32[64,64], index: 4, kind: input, shape index: {}]
  %s5 = inlined_call_operand.hbm [shape: f32[64,64], index: 5, kind: output, shape index: {}]
  %s6 = sld [smem:[#allocation0]]
  $region30: #{tpu_custom_call.1} parent=0
    _
  %s8 = ssub.s32 1, %s6
  %s9 = scalar_select 0, %s8, %s6
  $region1: #{tpu_custom_call.1} parent=0
    #allocation3 [shape = 'u8[32768]{0}', space=vmem, size = 0x8000, scoped, tag = 'output window, operand 0, single buffered']
    #allocation4 [shape = 's32[1]{0}', space=sflag, size = 0x4, scoped, tag = 'scoped memory for tpu_custom_call.1']
    %10 = vsyncpa [#allocation4], 0
    // Predicated region
    $region2: #{tpu_custom_call.1} parent=1 // pred_check
      _
    $region3: #{tpu_custom_call.1} parent=1 // pred_check_branch
      %12 = sbr.rel (0) target = $region5
    $region4: #{tpu_custom_call.1} parent=1 // pred_region
      _
    $region5: #{tpu_custom_call.1} parent=1 // pred_fallthru
      _
    // Predicated region
    $region6: #{tpu_custom_call.1} parent=1 // pred_check
      _
    $region7: #{tpu_custom_call.1} parent=1 // pred_check_branch
      %14 = sbr.rel (0) target = $region9
    $region8: #{tpu_custom_call.1} parent=1 // pred_region
      _
    $region9: #{tpu_custom_call.1} parent=1 // pred_fallthru
      _
    // Predicated region
    $region10: #{tpu_custom_call.1} parent=1 // pred_check
      _
    $region11: #{tpu_custom_call.1} parent=1 // pred_check_branch
      %16 = sbr.rel (0) target = $region13
    $region12: #{tpu_custom_call.1} parent=1 // pred_region
      _
    $region13: #{tpu_custom_call.1} parent=1 // pred_fallthru
      _
    // Predicated region
    $region14: #{tpu_custom_call.1} parent=1 // pred_check
      _
    $region15: #{tpu_custom_call.1} parent=1 // pred_check_branch
      %18 = sbr.rel (0) target = $region17
    $region16: #{tpu_custom_call.1} parent=1 // pred_region
      _
    $region17: #{tpu_custom_call.1} parent=1 // pred_fallthru
      _
    // Predicated region
    $region18: #{tpu_custom_call.1} parent=1 // pred_check
      _
    $region19: #{tpu_custom_call.1} parent=1 // pred_check_branch
      %20 = sbr.rel (0) target = $region21
    $region20: #{tpu_custom_call.1} parent=1 // pred_region
      _
    $region21: #{tpu_custom_call.1} parent=1 // pred_fallthru
      _
    %v21 = vld [vmem:[%s0] sm:$0xff]
    %v22 = vld [vmem:[%s0 + $0x8] sm:$0xff]
    %v23 = vld [vmem:[%s0 + $0x10] sm:$0xff]
    %v24 = vld [vmem:[%s0 + $0x18] sm:$0xff]
    %v25 = vld [vmem:[%s0 + $0x20] sm:$0xff]
    %v26 = vld [vmem:[%s0 + $0x28] sm:$0xff]
    %v27 = vld [vmem:[%s0 + $0x30] sm:$0xff]
    %v28 = vld [vmem:[%s0 + $0x38] sm:$0xff]
    %v29 = vld [vmem:[%s4] sm:$0xff]
    %v30 = vld [vmem:[%s4 + $0x8] sm:$0xff]
    %v31 = vld [vmem:[%s4 + $0x10] sm:$0xff]
    %v32 = vld [vmem:[%s4 + $0x18] sm:$0xff]
    %v33 = vld [vmem:[%s4 + $0x20] sm:$0xff]
    %v34 = vld [vmem:[%s4 + $0x28] sm:$0xff]
    %v35 = vld [vmem:[%s4 + $0x30] sm:$0xff]
    %v36 = vld [vmem:[%s4 + $0x38] sm:$0xff]
    %vm37 = vcmask 654336
    %38 = vst.msk [vmem:[#allocation2] sm:$0xff] %vm37, 0.0
    %vm39 = vcmask 648192
    %40 = vst.msk [vmem:[#allocation2 + $0x8] sm:$0x3] %vm39, 0.0
    %41 = vst.msk [vmem:[#allocation2 + $0x60] sm:$0xff] %vm37, 0.0
    %42 = vst.msk [vmem:[#allocation2 + $0x68] sm:$0x3] %vm39, 0.0
    %s43 = scalar_lea.vmem [#allocation2], 80
    %44 = vst.msk [vmem:[%s43] sm:$0xff] %vm37, 0.0
    %45 = vst.msk [vmem:[%s43 + $0x8] sm:$0x3] %vm39, 0.0
    %46 = vst.msk [vmem:[%s43 + $0x60] sm:$0xff] %vm37, 0.0
    %47 = vst.msk [vmem:[%s43 + $0x68] sm:$0x3] %vm39, 0.0
    %vm48 = vcmask 647168
    %49 = vst.msk [vmem:[#allocation2] sm:$0x1] %vm48, 0.0
    %50 = vst.msk [vmem:[#allocation2 + $0x10] sm:$0x1] %vm48, 0.0
    %51 = vst.msk [vmem:[#allocation2 + $0x20] sm:$0x1] %vm48, 0.0
    %52 = vst.msk [vmem:[#allocation2 + $0x30] sm:$0x1] %vm48, 0.0
    %53 = vst.msk [vmem:[#allocation2 + $0x40] sm:$0x1] %vm48, 0.0
    %54 = vst.msk [vmem:[#allocation2 + $0x50] sm:$0x1] %vm48, 0.0
    %55 = vst.msk [vmem:[#allocation2 + $0x60] sm:$0x1] %vm48, 0.0
    %56 = vst.msk [vmem:[#allocation2 + $0x70] sm:$0x1] %vm48, 0.0
    %57 = vst.msk [vmem:[#allocation2 + $0x80] sm:$0x1] %vm48, 0.0
    %58 = vst.msk [vmem:[#allocation2 + $0x90] sm:$0x1] %vm48, 0.0
    %59 = vst.msk [vmem:[#allocation2 + $0xa0] sm:$0x1] %vm48, 0.0
    %60 = vst.msk [vmem:[#allocation2 + $0xb0] sm:$0x1] %vm48, 0.0
    %61 = vst.msk [vmem:[#allocation2 + $0x9] sm:$0x1] %vm48, 0.0
    %62 = vst.msk [vmem:[#allocation2 + $0x19] sm:$0x1] %vm48, 0.0
    %63 = vst.msk [vmem:[#allocation2 + $0x29] sm:$0x1] %vm48, 0.0
    %64 = vst.msk [vmem:[#allocation2 + $0x39] sm:$0x1] %vm48, 0.0
    %65 = vst.msk [vmem:[#allocation2 + $0x49] sm:$0x1] %vm48, 0.0
    %66 = vst.msk [vmem:[#allocation2 + $0x59] sm:$0x1] %vm48, 0.0
    %67 = vst.msk [vmem:[#allocation2 + $0x69] sm:$0x1] %vm48, 0.0
    %68 = vst.msk [vmem:[#allocation2 + $0x79] sm:$0x1] %vm48, 0.0
    %69 = vst.msk [vmem:[#allocation2 + $0x89] sm:$0x1] %vm48, 0.0
    %70 = vst.msk [vmem:[#allocation2 + $0x99] sm:$0x1] %vm48, 0.0
    %71 = vst.msk [vmem:[#allocation2 + $0xa9] sm:$0x1] %vm48, 0.0
    %72 = vst.msk [vmem:[#allocation2 + $0xb9] sm:$0x1] %vm48, 0.0
    %81 = vrot.lane.b32.xlu0 %v21, 8
    %v82 = vpop.permute.xlu0 %81
    %83 = vrot.lane.b32.xlu0 %v22, 8
    %v84 = vpop.permute.xlu0 %83
    %85 = vrot.lane.b32.xlu0 %v23, 8
    %v86 = vpop.permute.xlu0 %85
    %87 = vrot.lane.b32.xlu0 %v24, 8
    %v88 = vpop.permute.xlu0 %87
    %89 = vrot.lane.b32.xlu0 %v25, 8
    %v90 = vpop.permute.xlu0 %89
    %91 = vrot.lane.b32.xlu0 %v26, 8
    %v92 = vpop.permute.xlu0 %91
    %93 = vrot.lane.b32.xlu0 %v27, 8
    %v94 = vpop.permute.xlu0 %93
    %95 = vrot.lane.b32.xlu0 %v28, 8
    %v96 = vpop.permute.xlu0 %95
    %vm105 = vcmask 64512
    %v106 = vsel %vm105, 0.0, %v82
    %v107 = vsel %vm105, 0.0, %v84
    %v108 = vsel %vm105, 0.0, %v86
    %v109 = vsel %vm105, 0.0, %v88
    %v110 = vsel %vm105, 0.0, %v90
    %v111 = vsel %vm105, 0.0, %v92
    %v112 = vsel %vm105, 0.0, %v94
    %v113 = vsel %vm105, 0.0, %v96
    %vm114 = vcmask 588800
    %v115 = vsel %vm114, %v106, 0.0
    %v116 = vsel %vm114, %v107, 0.0
    %v117 = vsel %vm114, %v108, 0.0
    %v118 = vsel %vm114, %v109, 0.0
    %v119 = vsel %vm114, %v110, 0.0
    %v120 = vsel %vm114, %v111, 0.0
    %v121 = vsel %vm114, %v112, 0.0
    %v122 = vsel %vm114, %v113, 0.0
    %s123 = scalar_lea.vmem [#allocation2], 16
    %124 = vst.msk [vmem:[%s123 + $0x1] sm:$0xff] %vm37, %v115
    %125 = vst.msk [vmem:[%s123 + $0x11] sm:$0xff] %vm37, %v116
    %126 = vst.msk [vmem:[%s123 + $0x21] sm:$0xff] %vm37, %v117
    %127 = vst.msk [vmem:[%s123 + $0x31] sm:$0xff] %vm37, %v118
    %128 = vst.msk [vmem:[%s123 + $0x61] sm:$0xff] %vm37, %v119
    %129 = vst.msk [vmem:[%s123 + $0x71] sm:$0xff] %vm37, %v120
    %130 = vst.msk [vmem:[%s123 + $0x81] sm:$0xff] %vm37, %v121
    %131 = vst.msk [vmem:[%s123 + $0x91] sm:$0xff] %vm37, %v122
    %v132 = vld [vmem:[#allocation2] sm:$0xff]
    %v133 = vld [vmem:[#allocation2 + $0x10] sm:$0xff]
    %v134 = vld [vmem:[#allocation2 + $0x20] sm:$0xff]
    %v135 = vld [vmem:[#allocation2 + $0x30] sm:$0xff]
    %v136 = vld [vmem:[#allocation2 + $0x60] sm:$0xff]
    %v137 = vld [vmem:[#allocation2 + $0x70] sm:$0xff]
    %v138 = vld [vmem:[#allocation2 + $0x80] sm:$0xff]
    %v139 = vld [vmem:[#allocation2 + $0x90] sm:$0xff]
    %v140 = vld [vmem:[#allocation2 + $0x1] sm:$0xff]
    %v141 = vld [vmem:[#allocation2 + $0x11] sm:$0xff]
    %v142 = vld [vmem:[#allocation2 + $0x21] sm:$0xff]
    %v143 = vld [vmem:[#allocation2 + $0x31] sm:$0xff]
    %v144 = vld [vmem:[#allocation2 + $0x61] sm:$0xff]
    %v145 = vld [vmem:[#allocation2 + $0x71] sm:$0xff]
    %v146 = vld [vmem:[#allocation2 + $0x81] sm:$0xff]
    %v147 = vld [vmem:[#allocation2 + $0x91] sm:$0xff]
    %v148 = vld [vmem:[#allocation2 + $0x2] sm:$0xff]
    %v149 = vld [vmem:[#allocation2 + $0x12] sm:$0xff]
    %v150 = vld [vmem:[#allocation2 + $0x22] sm:$0xff]
    %v151 = vld [vmem:[#allocation2 + $0x32] sm:$0xff]
    %v152 = vld [vmem:[#allocation2 + $0x62] sm:$0xff]
    %v153 = vld [vmem:[#allocation2 + $0x72] sm:$0xff]
    %v154 = vld [vmem:[#allocation2 + $0x82] sm:$0xff]
    %v155 = vld [vmem:[#allocation2 + $0x92] sm:$0xff]
    %v156 = vld [vmem:[%s123] sm:$0xff]
    %v157 = vld [vmem:[%s123 + $0x10] sm:$0xff]
    %v158 = vld [vmem:[%s123 + $0x20] sm:$0xff]
    %v159 = vld [vmem:[%s123 + $0x30] sm:$0xff]
    %v160 = vld [vmem:[%s123 + $0x60] sm:$0xff]
    %v161 = vld [vmem:[%s123 + $0x70] sm:$0xff]
    %v162 = vld [vmem:[%s123 + $0x80] sm:$0xff]
    %v163 = vld [vmem:[%s123 + $0x90] sm:$0xff]
    %v164 = vld [vmem:[%s123 + $0x1] sm:$0xff]
    %v165 = vld [vmem:[%s123 + $0x11] sm:$0xff]
    %v166 = vld [vmem:[%s123 + $0x21] sm:$0xff]
    %v167 = vld [vmem:[%s123 + $0x31] sm:$0xff]
    %v168 = vld [vmem:[%s123 + $0x61] sm:$0xff]
    %v169 = vld [vmem:[%s123 + $0x71] sm:$0xff]
    %v170 = vld [vmem:[%s123 + $0x81] sm:$0xff]
    %v171 = vld [vmem:[%s123 + $0x91] sm:$0xff]
    %v172 = vld [vmem:[%s123 + $0x2] sm:$0xff]
    %v173 = vld [vmem:[%s123 + $0x12] sm:$0xff]
    %v174 = vld [vmem:[%s123 + $0x22] sm:$0xff]
    %v175 = vld [vmem:[%s123 + $0x32] sm:$0xff]
    %v176 = vld [vmem:[%s123 + $0x62] sm:$0xff]
    %v177 = vld [vmem:[%s123 + $0x72] sm:$0xff]
    %v178 = vld [vmem:[%s123 + $0x82] sm:$0xff]
    %v179 = vld [vmem:[%s123 + $0x92] sm:$0xff]
    %s180 = scalar_lea.vmem [#allocation2], 32
    %v181 = vld [vmem:[%s180] sm:$0xff]
    %v182 = vld [vmem:[%s180 + $0x10] sm:$0xff]
    %v183 = vld [vmem:[%s180 + $0x20] sm:$0xff]
    %v184 = vld [vmem:[%s180 + $0x30] sm:$0xff]
    %v185 = vld [vmem:[%s180 + $0x60] sm:$0xff]
    %v186 = vld [vmem:[%s180 + $0x70] sm:$0xff]
    %v187 = vld [vmem:[%s180 + $0x80] sm:$0xff]
    %v188 = vld [vmem:[%s180 + $0x90] sm:$0xff]
    %v189 = vld [vmem:[%s180 + $0x1] sm:$0xff]
    %v190 = vld [vmem:[%s180 + $0x11] sm:$0xff]
    %v191 = vld [vmem:[%s180 + $0x21] sm:$0xff]
    %v192 = vld [vmem:[%s180 + $0x31] sm:$0xff]
    %v193 = vld [vmem:[%s180 + $0x61] sm:$0xff]
    %v194 = vld [vmem:[%s180 + $0x71] sm:$0xff]
    %v195 = vld [vmem:[%s180 + $0x81] sm:$0xff]
    %v196 = vld [vmem:[%s180 + $0x91] sm:$0xff]
    %v197 = vld [vmem:[%s180 + $0x2] sm:$0xff]
    %v198 = vld [vmem:[%s180 + $0x12] sm:$0xff]
    %v199 = vld [vmem:[%s180 + $0x22] sm:$0xff]
    %v200 = vld [vmem:[%s180 + $0x32] sm:$0xff]
    %v201 = vld [vmem:[%s180 + $0x62] sm:$0xff]
    %v202 = vld [vmem:[%s180 + $0x72] sm:$0xff]
    %v203 = vld [vmem:[%s180 + $0x82] sm:$0xff]
    %v204 = vld [vmem:[%s180 + $0x92] sm:$0xff]
    %213 = vrot.lane.b32.xlu0 %v140, 80
    %v214 = vpop.permute.xlu0 %213
    %215 = vrot.lane.b32.xlu0 %v141, 80
    %v216 = vpop.permute.xlu0 %215
    %217 = vrot.lane.b32.xlu0 %v142, 80
    %v218 = vpop.permute.xlu0 %217
    %219 = vrot.lane.b32.xlu0 %v143, 80
    %v220 = vpop.permute.xlu0 %219
    %221 = vrot.lane.b32.xlu0 %v144, 80
    %v222 = vpop.permute.xlu0 %221
    %223 = vrot.lane.b32.xlu0 %v145, 80
    %v224 = vpop.permute.xlu0 %223
    %225 = vrot.lane.b32.xlu0 %v146, 80
    %v226 = vpop.permute.xlu0 %225
    %227 = vrot.lane.b32.xlu0 %v147, 80
    %v228 = vpop.permute.xlu0 %227
    %245 = vrot.lane.b32.xlu0 %v148, 32
    %v246 = vpop.permute.xlu0 %245
    %247 = vrot.lane.b32.xlu0 %v149, 32
    %v248 = vpop.permute.xlu0 %247
    %249 = vrot.lane.b32.xlu0 %v150, 32
    %v250 = vpop.permute.xlu0 %249
    %251 = vrot.lane.b32.xlu0 %v151, 32
    %v252 = vpop.permute.xlu0 %251
    %253 = vrot.lane.b32.xlu0 %v152, 32
    %v254 = vpop.permute.xlu0 %253
    %255 = vrot.lane.b32.xlu0 %v153, 32
    %v256 = vpop.permute.xlu0 %255
    %257 = vrot.lane.b32.xlu0 %v154, 32
    %v258 = vpop.permute.xlu0 %257
    %259 = vrot.lane.b32.xlu0 %v155, 32
    %v260 = vpop.permute.xlu0 %259
    %277 = vrot.lane.b32.xlu0 %v156, 112
    %v278 = vpop.permute.xlu0 %277
    %279 = vrot.lane.b32.xlu0 %v157, 112
    %v280 = vpop.permute.xlu0 %279
    %281 = vrot.lane.b32.xlu0 %v158, 112
    %v282 = vpop.permute.xlu0 %281
    %283 = vrot.lane.b32.xlu0 %v159, 112
    %v284 = vpop.permute.xlu0 %283
    %285 = vrot.lane.b32.xlu0 %v160, 112
    %v286 = vpop.permute.xlu0 %285
    %287 = vrot.lane.b32.xlu0 %v161, 112
    %v288 = vpop.permute.xlu0 %287
    %289 = vrot.lane.b32.xlu0 %v162, 112
    %v290 = vpop.permute.xlu0 %289
    %291 = vrot.lane.b32.xlu0 %v163, 112
    %v292 = vpop.permute.xlu0 %291
    %309 = vrot.lane.b32.xlu0 %v164, 64
    %v310 = vpop.permute.xlu0 %309
    %311 = vrot.lane.b32.xlu0 %v165, 64
    %v312 = vpop.permute.xlu0 %311
    %313 = vrot.lane.b32.xlu0 %v166, 64
    %v314 = vpop.permute.xlu0 %313
    %315 = vrot.lane.b32.xlu0 %v167, 64
    %v316 = vpop.permute.xlu0 %315
    %317 = vrot.lane.b32.xlu0 %v168, 64
    %v318 = vpop.permute.xlu0 %317
    %319 = vrot.lane.b32.xlu0 %v169, 64
    %v320 = vpop.permute.xlu0 %319
    %321 = vrot.lane.b32.xlu0 %v170, 64
    %v322 = vpop.permute.xlu0 %321
    %323 = vrot.lane.b32.xlu0 %v171, 64
    %v324 = vpop.permute.xlu0 %323
    %341 = vrot.lane.b32.xlu0 %v172, 16
    %v342 = vpop.permute.xlu0 %341
    %343 = vrot.lane.b32.xlu0 %v173, 16
    %v344 = vpop.permute.xlu0 %343
    %345 = vrot.lane.b32.xlu0 %v174, 16
    %v346 = vpop.permute.xlu0 %345
    %347 = vrot.lane.b32.xlu0 %v175, 16
    %v348 = vpop.permute.xlu0 %347
    %349 = vrot.lane.b32.xlu0 %v176, 16
    %v350 = vpop.permute.xlu0 %349
    %351 = vrot.lane.b32.xlu0 %v177, 16
    %v352 = vpop.permute.xlu0 %351
    %353 = vrot.lane.b32.xlu0 %v178, 16
    %v354 = vpop.permute.xlu0 %353
    %355 = vrot.lane.b32.xlu0 %v179, 16
    %v356 = vpop.permute.xlu0 %355
    %373 = vrot.lane.b32.xlu0 %v181, 96
    %v374 = vpop.permute.xlu0 %373
    %375 = vrot.lane.b32.xlu0 %v182, 96
    %v376 = vpop.permute.xlu0 %375
    %377 = vrot.lane.b32.xlu0 %v183, 96
    %v378 = vpop.permute.xlu0 %377
    %379 = vrot.lane.b32.xlu0 %v184, 96
    %v380 = vpop.permute.xlu0 %379
    %381 = vrot.lane.b32.xlu0 %v185, 96
    %v382 = vpop.permute.xlu0 %381
    %383 = vrot.lane.b32.xlu0 %v186, 96
    %v384 = vpop.permute.xlu0 %383
    %385 = vrot.lane.b32.xlu0 %v187, 96
    %v386 = vpop.permute.xlu0 %385
    %387 = vrot.lane.b32.xlu0 %v188, 96
    %v388 = vpop.permute.xlu0 %387
    %405 = vrot.lane.b32.xlu0 %v189, 48
    %v406 = vpop.permute.xlu0 %405
    %407 = vrot.lane.b32.xlu0 %v190, 48
    %v408 = vpop.permute.xlu0 %407
    %409 = vrot.lane.b32.xlu0 %v191, 48
    %v410 = vpop.permute.xlu0 %409
    %411 = vrot.lane.b32.xlu0 %v192, 48
    %v412 = vpop.permute.xlu0 %411
    %413 = vrot.lane.b32.xlu0 %v193, 48
    %v414 = vpop.permute.xlu0 %413
    %415 = vrot.lane.b32.xlu0 %v194, 48
    %v416 = vpop.permute.xlu0 %415
    %417 = vrot.lane.b32.xlu0 %v195, 48
    %v418 = vpop.permute.xlu0 %417
    %419 = vrot.lane.b32.xlu0 %v196, 48
    %v420 = vpop.permute.xlu0 %419
    %v429 = vsel %vm37, %v132, %v214
    %v430 = vsel %vm37, %v133, %v216
    %v431 = vsel %vm37, %v134, %v218
    %v432 = vsel %vm37, %v135, %v220
    %v433 = vsel %vm37, %v136, %v222
    %v434 = vsel %vm37, %v137, %v224
    %v435 = vsel %vm37, %v138, %v226
    %v436 = vsel %vm37, %v139, %v228
    %vm437 = vcmask 261120
    %v438 = vsel %vm437, %v214, %v246
    %v439 = vsel %vm437, %v216, %v248
    %v440 = vsel %vm437, %v218, %v250
    %v441 = vsel %vm437, %v220, %v252
    %v442 = vsel %vm437, %v222, %v254
    %v443 = vsel %vm437, %v224, %v256
    %v444 = vsel %vm437, %v226, %v258
    %v445 = vsel %vm437, %v228, %v260
    %vm446 = vcmask 916480
    %v447 = vsel %vm446, %v438, %v278
    %v448 = vsel %vm446, %v439, %v280
    %v449 = vsel %vm446, %v440, %v282
    %v450 = vsel %vm446, %v441, %v284
    %v451 = vsel %vm446, %v442, %v286
    %v452 = vsel %vm446, %v443, %v288
    %v453 = vsel %vm446, %v444, %v290
    %v454 = vsel %vm446, %v445, %v292
    %vm455 = vcmask 523264
    %v456 = vsel %vm455, %v278, %v310
    %v457 = vsel %vm455, %v280, %v312
    %v458 = vsel %vm455, %v282, %v314
    %v459 = vsel %vm455, %v284, %v316
    %v460 = vsel %vm455, %v286, %v318
    %v461 = vsel %vm455, %v288, %v320
    %v462 = vsel %vm455, %v290, %v322
    %v463 = vsel %vm455, %v292, %v324
    %vm464 = vcmask 130048
    %v465 = vsel %vm464, %v310, %v342
    %v466 = vsel %vm464, %v312, %v344
    %v467 = vsel %vm464, %v314, %v346
    %v468 = vsel %vm464, %v316, %v348
    %v469 = vsel %vm464, %v318, %v350
    %v470 = vsel %vm464, %v320, %v352
    %v471 = vsel %vm464, %v322, %v354
    %v472 = vsel %vm464, %v324, %v356
    %vm473 = vcmask 785408
    %v474 = vsel %vm473, %v465, %v374
    %v475 = vsel %vm473, %v466, %v376
    %v476 = vsel %vm473, %v467, %v378
    %v477 = vsel %vm473, %v468, %v380
    %v478 = vsel %vm473, %v469, %v382
    %v479 = vsel %vm473, %v470, %v384
    %v480 = vsel %vm473, %v471, %v386
    %v481 = vsel %vm473, %v472, %v388
    %vm482 = vcmask 392192
    %v483 = vsel %vm482, %v374, %v406
    %v484 = vsel %vm482, %v376, %v408
    %v485 = vsel %vm482, %v378, %v410
    %v486 = vsel %vm482, %v380, %v412
    %v487 = vsel %vm482, %v382, %v414
    %v488 = vsel %vm482, %v384, %v416
    %v489 = vsel %vm482, %v386, %v418
    %v490 = vsel %vm482, %v388, %v420
    %v491 = vld [vmem:[%s1] sm:$0xff]
    %v492 = vld [vmem:[%s1 + $0x8] sm:$0xff]
    %v493 = vld [vmem:[%s1 + $0x10] sm:$0xff]
    %v494 = vld [vmem:[%s1 + $0x18] sm:$0xff]
    %v495 = vld [vmem:[%s1 + $0x20] sm:$0xff]
    %v496 = vld [vmem:[%s1 + $0x28] sm:$0xff]
    %v497 = vld [vmem:[%s1 + $0x30] sm:$0xff]
    %v498 = vld [vmem:[%s1 + $0x38] sm:$0xff]
    %v499 = vld [vmem:[%s1 + $0x40] sm:$0xff]
    %v500 = vld [vmem:[%s1 + $0x48] sm:$0xff]
    %v501 = vld [vmem:[%s1 + $0x50] sm:$0xff]
    %v502 = vld [vmem:[%s1 + $0x58] sm:$0xff]
    %v503 = vld [vmem:[%s1 + $0x60] sm:$0xff]
    %v504 = vld [vmem:[%s1 + $0x68] sm:$0xff]
    %v505 = vld [vmem:[%s1 + $0x70] sm:$0xff]
    %v506 = vld [vmem:[%s1 + $0x78] sm:$0xff]
    %v507 = vld [vmem:[%s1 + $0x80] sm:$0xff]
    %v508 = vld [vmem:[%s1 + $0x88] sm:$0xff]
    %v509 = vld [vmem:[%s1 + $0x90] sm:$0xff]
    %v510 = vld [vmem:[%s1 + $0x98] sm:$0xff]
    %v511 = vld [vmem:[%s1 + $0xa0] sm:$0xff]
    %v512 = vld [vmem:[%s1 + $0xa8] sm:$0xff]
    %v513 = vld [vmem:[%s1 + $0xb0] sm:$0xff]
    %v514 = vld [vmem:[%s1 + $0xb8] sm:$0xff]
    %v515 = vld [vmem:[%s1 + $0xc0] sm:$0xff]
    %v516 = vld [vmem:[%s1 + $0xc8] sm:$0xff]
    %v517 = vld [vmem:[%s1 + $0xd0] sm:$0xff]
    %v518 = vld [vmem:[%s1 + $0xd8] sm:$0xff]
    %v519 = vld [vmem:[%s1 + $0xe0] sm:$0xff]
    %v520 = vld [vmem:[%s1 + $0xe8] sm:$0xff]
    %v521 = vld [vmem:[%s1 + $0xf0] sm:$0xff]
    %v522 = vld [vmem:[%s1 + $0xf8] sm:$0xff]
    %v523 = vld [vmem:[%s1 + $0x100] sm:$0xff]
    %v524 = vld [vmem:[%s1 + $0x108] sm:$0xff]
    %v525 = vld [vmem:[%s1 + $0x110] sm:$0xff]
    %v526 = vld [vmem:[%s1 + $0x118] sm:$0xff]
    %v527 = vld [vmem:[%s1 + $0x120] sm:$0xff]
    %v528 = vld [vmem:[%s1 + $0x128] sm:$0xff]
    %v529 = vld [vmem:[%s1 + $0x130] sm:$0xff]
    %v530 = vld [vmem:[%s1 + $0x138] sm:$0xff]
    %v531 = vld [vmem:[%s1 + $0x140] sm:$0xff]
    %v532 = vld [vmem:[%s1 + $0x148] sm:$0xff]
    %v533 = vld [vmem:[%s1 + $0x150] sm:$0xff]
    %v534 = vld [vmem:[%s1 + $0x158] sm:$0xff]
    %v535 = vld [vmem:[%s1 + $0x160] sm:$0xff]
    %v536 = vld [vmem:[%s1 + $0x168] sm:$0xff]
    %v537 = vld [vmem:[%s1 + $0x170] sm:$0xff]
    %v538 = vld [vmem:[%s1 + $0x178] sm:$0xff]
    %v539 = vld [vmem:[%s1 + $0x180] sm:$0xff]
    %v540 = vld [vmem:[%s1 + $0x188] sm:$0xff]
    %v541 = vld [vmem:[%s1 + $0x190] sm:$0xff]
    %v542 = vld [vmem:[%s1 + $0x198] sm:$0xff]
    %v543 = vld [vmem:[%s1 + $0x1a0] sm:$0xff]
    %v544 = vld [vmem:[%s1 + $0x1a8] sm:$0xff]
    %v545 = vld [vmem:[%s1 + $0x1b0] sm:$0xff]
    %v546 = vld [vmem:[%s1 + $0x1b8] sm:$0xff]
    %v547 = vld [vmem:[%s1 + $0x1c0] sm:$0xff]
    %v548 = vld [vmem:[%s1 + $0x1c8] sm:$0xff]
    %v549 = vld [vmem:[%s1 + $0x1d0] sm:$0xff]
    %v550 = vld [vmem:[%s1 + $0x1d8] sm:$0xff]
    %v551 = vld [vmem:[%s1 + $0x1e0] sm:$0xff]
    %v552 = vld [vmem:[%s1 + $0x1e8] sm:$0xff]
    %v553 = vld [vmem:[%s1 + $0x1f0] sm:$0xff]
    %v554 = vld [vmem:[%s1 + $0x1f8] sm:$0xff]
    %v555 = vld [vmem:[%s1 + $0x200] sm:$0xff]
    %v556 = vld [vmem:[%s1 + $0x208] sm:$0xff]
    %v557 = vld [vmem:[%s1 + $0x210] sm:$0xff]
    %v558 = vld [vmem:[%s1 + $0x218] sm:$0xff]
    %v559 = vld [vmem:[%s1 + $0x220] sm:$0xff]
    %v560 = vld [vmem:[%s1 + $0x228] sm:$0xff]
    %v561 = vld [vmem:[%s1 + $0x230] sm:$0xff]
    %v562 = vld [vmem:[%s1 + $0x238] sm:$0xff]
    %v563 = vld [vmem:[%s1 + $0x240] sm:$0xff]
    %v564 = vld [vmem:[%s1 + $0x248] sm:$0xff]
    %v565 = vld [vmem:[%s1 + $0x250] sm:$0xff]
    %v566 = vld [vmem:[%s1 + $0x258] sm:$0xff]
    %v567 = vld [vmem:[%s1 + $0x260] sm:$0xff]
    %v568 = vld [vmem:[%s1 + $0x268] sm:$0xff]
    %v569 = vld [vmem:[%s1 + $0x270] sm:$0xff]
    %v570 = vld [vmem:[%s1 + $0x278] sm:$0xff]
    %v571 = vld [vmem:[%s1 + $0x280] sm:$0xff]
    %v572 = vld [vmem:[%s1 + $0x288] sm:$0xff]
    %v573 = vld [vmem:[%s1 + $0x290] sm:$0xff]
    %v574 = vld [vmem:[%s1 + $0x298] sm:$0xff]
    %v575 = vld [vmem:[%s1 + $0x2a0] sm:$0xff]
    %v576 = vld [vmem:[%s1 + $0x2a8] sm:$0xff]
    %v577 = vld [vmem:[%s1 + $0x2b0] sm:$0xff]
    %v578 = vld [vmem:[%s1 + $0x2b8] sm:$0xff]
    %v579 = vld [vmem:[%s1 + $0x2c0] sm:$0xff]
    %v580 = vld [vmem:[%s1 + $0x2c8] sm:$0xff]
    %v582 = vsel %vm37, %v197, 0
    %v585 = vsel %vm37, %v198, 0
    %v588 = vsel %vm37, %v199, 0
    %v591 = vsel %vm37, %v200, 0
    %v594 = vsel %vm37, %v201, 0
    %v597 = vsel %vm37, %v202, 0
    %v600 = vsel %vm37, %v203, 0
    %v603 = vsel %vm37, %v204, 0
    %605 = vmatprep.subr.mxu0 0.0
    %606 = vmatpush1.msra.mxu0 %v491
    %607 = vmatprep.subr.mxu0 0.0
    %608 = vmatpush1.msra.mxu0 %v492
    %609 = vmatprep.subr.mxu0 0.0
    %610 = vmatpush1.msra.mxu0 %v493
    %611 = vmatprep.subr.mxu0 0.0
    %612 = vmatpush1.msra.mxu0 %v494
    %613 = vmatprep.subr.mxu0 0.0
    %614 = vmatpush1.msra.mxu0 %v495
    %615 = vmatprep.subr.mxu0 0.0
    %616 = vmatpush1.msra.mxu0 %v496
    %617 = vmatprep.subr.mxu0 0.0
    %618 = vmatpush1.msra.mxu0 %v497
    %619 = vmatprep.subr.mxu0 0.0
    %620 = vmatpush1.msra.mxu0 %v498
    %621 = vmatprep.subr.mxu0 0.0
    %622 = vmatpush1.msra.mxu0 %v499
    %623 = vmatprep.subr.mxu0 0.0
    %624 = vmatpush1.msra.mxu0 %v500
    %625 = vmatprep.subr.mxu0 0.0
    %626 = vmatpush1.msra.mxu0 %v501
    %627 = vmatprep.subr.mxu0 0.0
    %628 = vmatpush1.msra.mxu0 %v502
    %629 = vmatprep.subr.mxu0 0.0
    %630 = vmatpush1.msra.mxu0 %v503
    %631 = vmatprep.subr.mxu0 0.0
    %632 = vmatpush1.msra.mxu0 %v504
    %633 = vmatprep.subr.mxu0 0.0
    %634 = vmatpush1.msra.mxu0 %v505
    %635 = vmatprep.subr.mxu0 0.0
    %636 = vmatpush1.msra.mxu0 %v506
    %637 = vmatprep.subr.mxu0 0.0
    %638 = vmatpush1.msra.mxu0 %v507
    %639 = vmatprep.subr.mxu0 0.0
    %640 = vmatpush1.msra.mxu0 %v508
    %641 = vmatprep.subr.mxu0 0.0
    %642 = vmatpush1.msra.mxu0 %v509
    %643 = vmatprep.subr.mxu0 0.0
    %644 = vmatpush1.msra.mxu0 %v510
    %645 = vmatprep.subr.mxu0 0.0
    %646 = vmatpush1.msra.mxu0 %v511
    %647 = vmatprep.subr.mxu0 0.0
    %648 = vmatpush1.msra.mxu0 %v512
    %649 = vmatprep.subr.mxu0 0.0
    %650 = vmatpush1.msra.mxu0 %v513
    %651 = vmatprep.subr.mxu0 0.0
    %652 = vmatpush1.msra.mxu0 %v514
    %653 = vmatprep.subr.mxu0 0.0
    %654 = vmatpush1.msra.mxu0 %v515
    %655 = vmatprep.subr.mxu0 0.0
    %656 = vmatpush1.msra.mxu0 %v516
    %657 = vmatprep.subr.mxu0 0.0
    %658 = vmatpush1.msra.mxu0 %v517
    %659 = vmatprep.subr.mxu0 0.0
    %660 = vmatpush1.msra.mxu0 %v518
    %661 = vmatprep.subr.mxu0 0.0
    %662 = vmatpush1.msra.mxu0 %v519
    %663 = vmatprep.subr.mxu0 0.0
    %664 = vmatpush1.msra.mxu0 %v520
    %665 = vmatprep.subr.mxu0 0.0
    %666 = vmatpush1.msra.mxu0 %v521
    %667 = vmatprep.subr.mxu0 0.0
    %668 = vmatpush1.msra.mxu0 %v522
    %669 = vmatprep.mubr.f32.mxu0 %v447
    %670 = vmatmul.mubr.f32.gmra.mrb[0].mxu0 %v429
    %v671 = vpop.f32.mrb[0].mxu0
    %v672 = vadd.f32 0.0, %v671
    %v673 = vpop.f32.mrb[0].mxu0
    %674 = vmatprep.mubr.f32.mxu0 %v448
    %675 = vmatmul.mubr.f32.gmra.mrb[0].mxu0 %v430
    %v676 = vpop.f32.mrb[0].mxu0
    %v677 = vadd.f32 0.0, %v676
    %v678 = vpop.f32.mrb[0].mxu0
    %679 = vmatprep.mubr.f32.mxu0 %v449
    %680 = vmatmul.mubr.f32.gmra.mrb[0].mxu0 %v431
    %v681 = vpop.f32.mrb[0].mxu0
    %v682 = vadd.f32 0.0, %v681
    %v683 = vpop.f32.mrb[0].mxu0
    %684 = vmatprep.mubr.f32.mxu0 %v450
    %685 = vmatmul.mubr.f32.gmra.mrb[0].mxu0 %v432
    %v686 = vpop.f32.mrb[0].mxu0
    %v687 = vadd.f32 0.0, %v686
    %v688 = vpop.f32.mrb[0].mxu0
    %689 = vmatprep.mubr.f32.mxu0 %v451
    %690 = vmatmul.mubr.f32.gmra.mrb[0].mxu0 %v433
    %v691 = vpop.f32.mrb[0].mxu0
    %v692 = vadd.f32 0.0, %v691
    %v693 = vpop.f32.mrb[0].mxu0
    %694 = vmatprep.mubr.f32.mxu0 %v452
    %695 = vmatmul.mubr.f32.gmra.mrb[0].mxu0 %v434
    %v696 = vpop.f32.mrb[0].mxu0
    %v697 = vadd.f32 0.0, %v696
    %v698 = vpop.f32.mrb[0].mxu0
    %699 = vmatprep.mubr.f32.mxu0 %v453
    %700 = vmatmul.mubr.f32.gmra.mrb[0].mxu0 %v435
    %v701 = vpop.f32.mrb[0].mxu0
    %v702 = vadd.f32 0.0, %v701
    %v703 = vpop.f32.mrb[0].mxu0
    %704 = vmatprep.mubr.f32.mxu0 %v454
    %705 = vmatmul.mubr.f32.gmra.mrb[0].mxu0 %v436
    %v706 = vpop.f32.mrb[0].mxu0
    %v707 = vadd.f32 0.0, %v706
    %v708 = vpop.f32.mrb[0].mxu0
    %709 = vdwg.mxu0
    %710 = vmatprep.subr.mxu0 0.0
    %711 = vmatpush1.msra.mxu0 %v523
    %712 = vmatprep.subr.mxu0 0.0
    %713 = vmatpush1.msra.mxu0 %v524
    %714 = vmatprep.subr.mxu0 0.0
    %715 = vmatpush1.msra.mxu0 %v525
    %716 = vmatprep.subr.mxu0 0.0
    %717 = vmatpush1.msra.mxu0 %v526
    %718 = vmatprep.subr.mxu0 0.0
    %719 = vmatpush1.msra.mxu0 %v527
    %720 = vmatprep.subr.mxu0 0.0
    %721 = vmatpush1.msra.mxu0 %v528
    %722 = vmatprep.subr.mxu0 0.0
    %723 = vmatpush1.msra.mxu0 %v529
    %724 = vmatprep.subr.mxu0 0.0
    %725 = vmatpush1.msra.mxu0 %v530
    %726 = vmatprep.subr.mxu0 0.0
    %727 = vmatpush1.msra.mxu0 %v531
    %728 = vmatprep.subr.mxu0 0.0
    %729 = vmatpush1.msra.mxu0 %v532
    %730 = vmatprep.subr.mxu0 0.0
    %731 = vmatpush1.msra.mxu0 %v533
    %732 = vmatprep.subr.mxu0 0.0
    %733 = vmatpush1.msra.mxu0 %v534
    %734 = vmatprep.subr.mxu0 0.0
    %735 = vmatpush1.msra.mxu0 %v535
    %736 = vmatprep.subr.mxu0 0.0
    %737 = vmatpush1.msra.mxu0 %v536
    %738 = vmatprep.subr.mxu0 0.0
    %739 = vmatpush1.msra.mxu0 %v537
    %740 = vmatprep.subr.mxu0 0.0
    %741 = vmatpush1.msra.mxu0 %v538
    %742 = vmatprep.subr.mxu0 0.0
    %743 = vmatpush1.msra.mxu0 %v539
    %744 = vmatprep.subr.mxu0 0.0
    %745 = vmatpush1.msra.mxu0 %v540
    %746 = vmatprep.subr.mxu0 0.0
    %747 = vmatpush1.msra.mxu0 %v541
    %748 = vmatprep.subr.mxu0 0.0
    %749 = vmatpush1.msra.mxu0 %v542
    %750 = vmatprep.subr.mxu0 0.0
    %751 = vmatpush1.msra.mxu0 %v543
    %752 = vmatprep.subr.mxu0 0.0
    %753 = vmatpush1.msra.mxu0 %v544
    %754 = vmatprep.subr.mxu0 0.0
    %755 = vmatpush1.msra.mxu0 %v545
    %756 = vmatprep.subr.mxu0 0.0
    %757 = vmatpush1.msra.mxu0 %v546
    %758 = vmatprep.subr.mxu0 0.0
    %759 = vmatpush1.msra.mxu0 %v547
    %760 = vmatprep.subr.mxu0 0.0
    %761 = vmatpush1.msra.mxu0 %v548
    %762 = vmatprep.subr.mxu0 0.0
    %763 = vmatpush1.msra.mxu0 %v549
    %764 = vmatprep.subr.mxu0 0.0
    %765 = vmatpush1.msra.mxu0 %v550
    %766 = vmatprep.subr.mxu0 0.0
    %767 = vmatpush1.msra.mxu0 %v551
    %768 = vmatprep.subr.mxu0 0.0
    %769 = vmatpush1.msra.mxu0 %v552
    %770 = vmatprep.subr.mxu0 0.0
    %771 = vmatpush1.msra.mxu0 %v553
    %772 = vmatprep.subr.mxu0 0.0
    %773 = vmatpush1.msra.mxu0 %v554
    %774 = vmatprep.mubr.f32.mxu0 %v474
    %775 = vmatmul.mubr.f32.gmra.mrb[0].mxu0 %v456
    %v776 = vpop.f32.mrb[0].mxu0
    %v777 = vadd.f32 %v672, %v776
    %v778 = vpop.f32.mrb[0].mxu0
    %779 = vmatprep.mubr.f32.mxu0 %v475
    %780 = vmatmul.mubr.f32.gmra.mrb[0].mxu0 %v457
    %v781 = vpop.f32.mrb[0].mxu0
    %v782 = vadd.f32 %v677, %v781
    %v783 = vpop.f32.mrb[0].mxu0
    %784 = vmatprep.mubr.f32.mxu0 %v476
    %785 = vmatmul.mubr.f32.gmra.mrb[0].mxu0 %v458
    %v786 = vpop.f32.mrb[0].mxu0
    %v787 = vadd.f32 %v682, %v786
    %v788 = vpop.f32.mrb[0].mxu0
    %789 = vmatprep.mubr.f32.mxu0 %v477
    %790 = vmatmul.mubr.f32.gmra.mrb[0].mxu0 %v459
    %v791 = vpop.f32.mrb[0].mxu0
    %v792 = vadd.f32 %v687, %v791
    %v793 = vpop.f32.mrb[0].mxu0
    %794 = vmatprep.mubr.f32.mxu0 %v478
    %795 = vmatmul.mubr.f32.gmra.mrb[0].mxu0 %v460
    %v796 = vpop.f32.mrb[0].mxu0
    %v797 = vadd.f32 %v692, %v796
    %v798 = vpop.f32.mrb[0].mxu0
    %799 = vmatprep.mubr.f32.mxu0 %v479
    %800 = vmatmul.mubr.f32.gmra.mrb[0].mxu0 %v461
    %v801 = vpop.f32.mrb[0].mxu0
    %v802 = vadd.f32 %v697, %v801
    %v803 = vpop.f32.mrb[0].mxu0
    %804 = vmatprep.mubr.f32.mxu0 %v480
    %805 = vmatmul.mubr.f32.gmra.mrb[0].mxu0 %v462
    %v806 = vpop.f32.mrb[0].mxu0
    %v807 = vadd.f32 %v702, %v806
    %v808 = vpop.f32.mrb[0].mxu0
    %809 = vmatprep.mubr.f32.mxu0 %v481
    %810 = vmatmul.mubr.f32.gmra.mrb[0].mxu0 %v463
    %v811 = vpop.f32.mrb[0].mxu0
    %v812 = vadd.f32 %v707, %v811
    %v813 = vpop.f32.mrb[0].mxu0
    %814 = vdwg.mxu0
    %815 = vmatprep.subr.mxu0 0.0
    %816 = vmatpush1.msra.mxu0 %v555
    %817 = vmatprep.subr.mxu0 0.0
    %818 = vmatpush1.msra.mxu0 %v556
    %819 = vmatprep.subr.mxu0 0.0
    %820 = vmatpush1.msra.mxu0 %v557
    %821 = vmatprep.subr.mxu0 0.0
    %822 = vmatpush1.msra.mxu0 %v558
    %823 = vmatprep.subr.mxu0 0.0
    %824 = vmatpush1.msra.mxu0 %v559
    %825 = vmatprep.subr.mxu0 0.0
    %826 = vmatpush1.msra.mxu0 %v560
    %827 = vmatprep.subr.mxu0 0.0
    %828 = vmatpush1.msra.mxu0 %v561
    %829 = vmatprep.subr.mxu0 0.0
    %830 = vmatpush1.msra.mxu0 %v562
    %831 = vmatprep.subr.mxu0 0.0
    %832 = vmatpush1.msra.mxu0 %v563
    %833 = vmatprep.subr.mxu0 0.0
    %834 = vmatpush1.msra.mxu0 %v564
    %835 = vmatprep.subr.mxu0 0.0
    %836 = vmatpush1.msra.mxu0 %v565
    %837 = vmatprep.subr.mxu0 0.0
    %838 = vmatpush1.msra.mxu0 %v566
    %839 = vmatprep.subr.mxu0 0.0
    %840 = vmatpush1.msra.mxu0 %v567
    %841 = vmatprep.subr.mxu0 0.0
    %842 = vmatpush1.msra.mxu0 %v568
    %843 = vmatprep.subr.mxu0 0.0
    %844 = vmatpush1.msra.mxu0 %v569
    %845 = vmatprep.subr.mxu0 0.0
    %846 = vmatpush1.msra.mxu0 %v570
    %847 = vmatprep.subr.mxu0 0.0
    %848 = vmatpush1.msra.mxu0 %v571
    %849 = vmatprep.subr.mxu0 0.0
    %850 = vmatpush1.msra.mxu0 %v572
    %851 = vmatprep.subr.mxu0 0.0
    %852 = vmatpush1.msra.mxu0 %v573
    %853 = vmatprep.subr.mxu0 0.0
    %854 = vmatpush1.msra.mxu0 %v574
    %855 = vmatprep.subr.mxu0 0.0
    %856 = vmatpush1.msra.mxu0 %v575
    %857 = vmatprep.subr.mxu0 0.0
    %858 = vmatpush1.msra.mxu0 %v576
    %859 = vmatprep.subr.mxu0 0.0
    %860 = vmatpush1.msra.mxu0 %v577
    %861 = vmatprep.subr.mxu0 0.0
    %862 = vmatpush1.msra.mxu0 %v578
    %863 = vmatprep.subr.mxu0 0.0
    %864 = vmatpush1.msra.mxu0 %v579
    %865 = vmatprep.subr.mxu0 0.0
    %866 = vmatpush1.msra.mxu0 %v580
    %867 = vmatprep.subr.mxu0 0.0
    %868 = vmatpush1.msra.mxu0 0.0
    %869 = vmatprep.subr.mxu0 0.0
    %870 = vmatpush1.msra.mxu0 0.0
    %871 = vmatprep.subr.mxu0 0.0
    %872 = vmatpush1.msra.mxu0 0.0
    %873 = vmatprep.subr.mxu0 0.0
    %874 = vmatpush1.msra.mxu0 0.0
    %875 = vmatprep.subr.mxu0 0.0
    %876 = vmatpush1.msra.mxu0 0.0
    %877 = vmatprep.subr.mxu0 0.0
    %878 = vmatpush1.msra.mxu0 0.0
    %879 = vmatprep.mubr.f32.mxu0 %v582
    %880 = vmatmul.mubr.f32.gmra.mrb[0].mxu0 %v483
    %v881 = vpop.f32.mrb[0].mxu0
    %v882 = vadd.f32 %v777, %v881
    %v883 = vpop.f32.mrb[0].mxu0
    %884 = vmatprep.mubr.f32.mxu0 %v585
    %885 = vmatmul.mubr.f32.gmra.mrb[0].mxu0 %v484
    %v886 = vpop.f32.mrb[0].mxu0
    %v887 = vadd.f32 %v782, %v886
    %v888 = vpop.f32.mrb[0].mxu0
    %889 = vmatprep.mubr.f32.mxu0 %v588
    %890 = vmatmul.mubr.f32.gmra.mrb[0].mxu0 %v485
    %v891 = vpop.f32.mrb[0].mxu0
    %v892 = vadd.f32 %v787, %v891
    %v893 = vpop.f32.mrb[0].mxu0
    %894 = vmatprep.mubr.f32.mxu0 %v591
    %895 = vmatmul.mubr.f32.gmra.mrb[0].mxu0 %v486
    %v896 = vpop.f32.mrb[0].mxu0
    %v897 = vadd.f32 %v792, %v896
    %v898 = vpop.f32.mrb[0].mxu0
    %899 = vmatprep.mubr.f32.mxu0 %v594
    %900 = vmatmul.mubr.f32.gmra.mrb[0].mxu0 %v487
    %v901 = vpop.f32.mrb[0].mxu0
    %v902 = vadd.f32 %v797, %v901
    %v903 = vpop.f32.mrb[0].mxu0
    %904 = vmatprep.mubr.f32.mxu0 %v597
    %905 = vmatmul.mubr.f32.gmra.mrb[0].mxu0 %v488
    %v906 = vpop.f32.mrb[0].mxu0
    %v907 = vadd.f32 %v802, %v906
    %v908 = vpop.f32.mrb[0].mxu0
    %909 = vmatprep.mubr.f32.mxu0 %v600
    %910 = vmatmul.mubr.f32.gmra.mrb[0].mxu0 %v489
    %v911 = vpop.f32.mrb[0].mxu0
    %v912 = vadd.f32 %v807, %v911
    %v913 = vpop.f32.mrb[0].mxu0
    %914 = vmatprep.mubr.f32.mxu0 %v603
    %915 = vmatmul.mubr.f32.gmra.mrb[0].mxu0 %v490
    %v916 = vpop.f32.mrb[0].mxu0
    %v917 = vadd.f32 %v812, %v916
    %v918 = vpop.f32.mrb[0].mxu0
    %919 = vdwg.mxu0
    %v920 = vld [vmem:[%s3] sm:$0x1]
    %v921 = vld [vmem:[%s3 + $0x1] sm:$0x1]
    %v922 = vsel %vm455, %v882, 0.0
    %v923 = vsel %vm455, %v887, 0.0
    %v924 = vadd.f32 %v922, %v923
    %v925 = vsel %vm455, %v892, 0.0
    %v926 = vadd.f32 %v924, %v925
    %v927 = vsel %vm455, %v897, 0.0
    %v928 = vadd.f32 %v926, %v927
    %v929 = vsel %vm455, %v902, 0.0
    %v930 = vadd.f32 %v928, %v929
    %v931 = vsel %vm455, %v907, 0.0
    %v932 = vadd.f32 %v930, %v931
    %v933 = vsel %vm455, %v912, 0.0
    %v934 = vadd.f32 %v932, %v933
    %v935 = vsel %vm455, %v917, 0.0
    %v936 = vadd.f32 %v934, %v935
    %v937 = vrot.slane %v936, 4
    %v938 = vadd.f32 %v936, %v937
    %v939 = vrot.slane %v938, 2
    %v940 = vadd.f32 %v938, %v939
    %v941 = vrot.slane %v940, 1
    %v942 = vadd.f32 %v940, %v941
    %v943 = vmul.f32 %v882, %v882
    %v944 = vmul.f32 %v887, %v887
    %v945 = vmul.f32 %v892, %v892
    %v946 = vmul.f32 %v897, %v897
    %v947 = vmul.f32 %v902, %v902
    %v948 = vmul.f32 %v907, %v907
    %v949 = vmul.f32 %v912, %v912
    %v950 = vmul.f32 %v917, %v917
    %v951 = vsel %vm455, %v943, 0.0
    %v952 = vsel %vm455, %v944, 0.0
    %v953 = vadd.f32 %v951, %v952
    %v954 = vsel %vm455, %v945, 0.0
    %v955 = vadd.f32 %v953, %v954
    %v956 = vsel %vm455, %v946, 0.0
    %v957 = vadd.f32 %v955, %v956
    %v958 = vsel %vm455, %v947, 0.0
    %v959 = vadd.f32 %v957, %v958
    %v960 = vsel %vm455, %v948, 0.0
    %v961 = vadd.f32 %v959, %v960
    %v962 = vsel %vm455, %v949, 0.0
    %v963 = vadd.f32 %v961, %v962
    %v964 = vsel %vm455, %v950, 0.0
    %v965 = vadd.f32 %v963, %v964
    %v966 = vrot.slane %v965, 4
    %v967 = vadd.f32 %v965, %v966
    %v968 = vrot.slane %v967, 2
    %v969 = vadd.f32 %v967, %v968
    %v970 = vrot.slane %v969, 1
    %v971 = vadd.f32 %v969, %v970
    %v973 = vsel %vm455, %v942, 0
    %975 = vmatprep.subr.mxu0 0.0
    %976 = vmatpush1.msra.mxu0 %v29
    %977 = vmatprep.subr.mxu0 0.0
    %978 = vmatpush1.msra.mxu0 %v30
    %979 = vmatprep.subr.mxu0 0.0
    %980 = vmatpush1.msra.mxu0 %v31
    %981 = vmatprep.subr.mxu0 0.0
    %982 = vmatpush1.msra.mxu0 %v32
    %983 = vmatprep.subr.mxu0 0.0
    %984 = vmatpush1.msra.mxu0 %v33
    %985 = vmatprep.subr.mxu0 0.0
    %986 = vmatpush1.msra.mxu0 %v34
    %987 = vmatprep.subr.mxu0 0.0
    %988 = vmatpush1.msra.mxu0 %v35
    %989 = vmatprep.subr.mxu0 0.0
    %990 = vmatpush1.msra.mxu0 %v36
    %991 = vmatprep.subr.mxu0 0.0
    %992 = vmatpush1.msra.mxu0 0.0
    %993 = vmatprep.subr.mxu0 0.0
    %994 = vmatpush1.msra.mxu0 0.0
    %995 = vmatprep.subr.mxu0 0.0
    %996 = vmatpush1.msra.mxu0 0.0
    %997 = vmatprep.subr.mxu0 0.0
    %998 = vmatpush1.msra.mxu0 0.0
    %999 = vmatprep.subr.mxu0 0.0
    %1000 = vmatpush1.msra.mxu0 0.0
    %1001 = vmatprep.subr.mxu0 0.0
    %1002 = vmatpush1.msra.mxu0 0.0
    %1003 = vmatprep.subr.mxu0 0.0
    %1004 = vmatpush1.msra.mxu0 0.0
    %1005 = vmatprep.subr.mxu0 0.0
    %1006 = vmatpush1.msra.mxu0 0.0
    %1007 = vmatprep.subr.mxu0 0.0
    %1008 = vmatpush1.msra.mxu0 0.0
    %1009 = vmatprep.subr.mxu0 0.0
    %1010 = vmatpush1.msra.mxu0 0.0
    %1011 = vmatprep.subr.mxu0 0.0
    %1012 = vmatpush1.msra.mxu0 0.0
    %1013 = vmatprep.subr.mxu0 0.0
    %1014 = vmatpush1.msra.mxu0 0.0
    %1015 = vmatprep.subr.mxu0 0.0
    %1016 = vmatpush1.msra.mxu0 0.0
    %1017 = vmatprep.subr.mxu0 0.0
    %1018 = vmatpush1.msra.mxu0 0.0
    %1019 = vmatprep.subr.mxu0 0.0
    %1020 = vmatpush1.msra.mxu0 0.0
    %1021 = vmatprep.subr.mxu0 0.0
    %1022 = vmatpush1.msra.mxu0 0.0
    %1023 = vmatprep.subr.mxu0 0.0
    %1024 = vmatpush1.msra.mxu0 0.0
    %1025 = vmatprep.subr.mxu0 0.0
    %1026 = vmatpush1.msra.mxu0 0.0
    %1027 = vmatprep.subr.mxu0 0.0
    %1028 = vmatpush1.msra.mxu0 0.0
    %1029 = vmatprep.subr.mxu0 0.0
    %1030 = vmatpush1.msra.mxu0 0.0
    %1031 = vmatprep.subr.mxu0 0.0
    %1032 = vmatpush1.msra.mxu0 0.0
    %1033 = vmatprep.subr.mxu0 0.0
    %1034 = vmatpush1.msra.mxu0 0.0
    %1035 = vmatprep.subr.mxu0 0.0
    %1036 = vmatpush1.msra.mxu0 0.0
    %1037 = vmatprep.subr.mxu0 0.0
    %1038 = vmatpush1.msra.mxu0 0.0
    %1039 = vmatprep.mubr.f32.mxu0 0.0
    %1040 = vmatmul.mubr.f32.gmra.mrb[0].mxu0 %v973
    %v1041 = vpop.f32.mrb[0].mxu0
    %v1042 = vadd.f32 0.0, %v1041
    %v1043 = vpop.f32.mrb[0].mxu0
    %1044 = vdwg.mxu0
    %v1045 = vmul.f32 %v1042, 0.001953125
    %v1047 = vsel %vm455, %v971, 0
    %1049 = vmatprep.subr.mxu0 0.0
    %1050 = vmatpush1.msra.mxu0 %v29
    %1051 = vmatprep.subr.mxu0 0.0
    %1052 = vmatpush1.msra.mxu0 %v30
    %1053 = vmatprep.subr.mxu0 0.0
    %1054 = vmatpush1.msra.mxu0 %v31
    %1055 = vmatprep.subr.mxu0 0.0
    %1056 = vmatpush1.msra.mxu0 %v32
    %1057 = vmatprep.subr.mxu0 0.0
    %1058 = vmatpush1.msra.mxu0 %v33
    %1059 = vmatprep.subr.mxu0 0.0
    %1060 = vmatpush1.msra.mxu0 %v34
    %1061 = vmatprep.subr.mxu0 0.0
    %1062 = vmatpush1.msra.mxu0 %v35
    %1063 = vmatprep.subr.mxu0 0.0
    %1064 = vmatpush1.msra.mxu0 %v36
    %1065 = vmatprep.subr.mxu0 0.0
    %1066 = vmatpush1.msra.mxu0 0.0
    %1067 = vmatprep.subr.mxu0 0.0
    %1068 = vmatpush1.msra.mxu0 0.0
    %1069 = vmatprep.subr.mxu0 0.0
    %1070 = vmatpush1.msra.mxu0 0.0
    %1071 = vmatprep.subr.mxu0 0.0
    %1072 = vmatpush1.msra.mxu0 0.0
    %1073 = vmatprep.subr.mxu0 0.0
    %1074 = vmatpush1.msra.mxu0 0.0
    %1075 = vmatprep.subr.mxu0 0.0
    %1076 = vmatpush1.msra.mxu0 0.0
    %1077 = vmatprep.subr.mxu0 0.0
    %1078 = vmatpush1.msra.mxu0 0.0
    %1079 = vmatprep.subr.mxu0 0.0
    %1080 = vmatpush1.msra.mxu0 0.0
    %1081 = vmatprep.subr.mxu0 0.0
    %1082 = vmatpush1.msra.mxu0 0.0
    %1083 = vmatprep.subr.mxu0 0.0
    %1084 = vmatpush1.msra.mxu0 0.0
    %1085 = vmatprep.subr.mxu0 0.0
    %1086 = vmatpush1.msra.mxu0 0.0
    %1087 = vmatprep.subr.mxu0 0.0
    %1088 = vmatpush1.msra.mxu0 0.0
    %1089 = vmatprep.subr.mxu0 0.0
    %1090 = vmatpush1.msra.mxu0 0.0
    %1091 = vmatprep.subr.mxu0 0.0
    %1092 = vmatpush1.msra.mxu0 0.0
    %1093 = vmatprep.subr.mxu0 0.0
    %1094 = vmatpush1.msra.mxu0 0.0
    %1095 = vmatprep.subr.mxu0 0.0
    %1096 = vmatpush1.msra.mxu0 0.0
    %1097 = vmatprep.subr.mxu0 0.0
    %1098 = vmatpush1.msra.mxu0 0.0
    %1099 = vmatprep.subr.mxu0 0.0
    %1100 = vmatpush1.msra.mxu0 0.0
    %1101 = vmatprep.subr.mxu0 0.0
    %1102 = vmatpush1.msra.mxu0 0.0
    %1103 = vmatprep.subr.mxu0 0.0
    %1104 = vmatpush1.msra.mxu0 0.0
    %1105 = vmatprep.subr.mxu0 0.0
    %1106 = vmatpush1.msra.mxu0 0.0
    %1107 = vmatprep.subr.mxu0 0.0
    %1108 = vmatpush1.msra.mxu0 0.0
    %1109 = vmatprep.subr.mxu0 0.0
    %1110 = vmatpush1.msra.mxu0 0.0
    %1111 = vmatprep.subr.mxu0 0.0
    %1112 = vmatpush1.msra.mxu0 0.0
    %1113 = vmatprep.mubr.f32.mxu0 0.0
    %1114 = vmatmul.mubr.f32.gmra.mrb[0].mxu0 %v1047
    %v1115 = vpop.f32.mrb[0].mxu0
    %v1116 = vadd.f32 0.0, %v1115
    %v1117 = vpop.f32.mrb[0].mxu0
    %1118 = vdwg.mxu0
    %v1119 = vmul.f32 %v1116, 0.001953125
    %v1120 = vmul.f32 %v1045, %v1045
    %v1121 = vsub.f32 %v1119, %v1120
    %v1122 = vlaneseq
    %v1123 = vshrl.u32 %v1122, 7
    %v1124 = vsub.s32 0, %v1123
    %v1125 = vrot.slane %v1045, %v1124
    %v1126 = vsub.f32 %v882, %v1125
    %v1127 = vsub.f32 %v887, %v1125
    %v1128 = vsub.f32 %v892, %v1125
    %v1129 = vsub.f32 %v897, %v1125
    %v1130 = vsub.f32 %v902, %v1125
    %v1131 = vsub.f32 %v907, %v1125
    %v1132 = vsub.f32 %v912, %v1125
    %v1133 = vsub.f32 %v917, %v1125
    %v1134 = vadd.f32 %v1121, 1e-05
    %v1135 = vrsqrt.pop %v1134
    %v1136 = vmul.f32 %v1135, %v920
    %v1137 = vlaneseq
    %v1138 = vshrl.u32 %v1137, 7
    %v1139 = vsub.s32 0, %v1138
    %v1140 = vrot.slane %v1136, %v1139
    %v1141 = vmul.f32 %v1126, %v1140
    %v1142 = vmul.f32 %v1127, %v1140
    %v1143 = vmul.f32 %v1128, %v1140
    %v1144 = vmul.f32 %v1129, %v1140
    %v1145 = vmul.f32 %v1130, %v1140
    %v1146 = vmul.f32 %v1131, %v1140
    %v1147 = vmul.f32 %v1132, %v1140
    %v1148 = vmul.f32 %v1133, %v1140
    %v1149 = vlaneseq
    %v1150 = vshrl.u32 %v1149, 7
    %v1151 = vsub.s32 0, %v1150
    %v1152 = vrot.slane %v921, %v1151
    %v1153 = vadd.f32 %v1141, %v1152
    %v1154 = vadd.f32 %v1142, %v1152
    %v1155 = vadd.f32 %v1143, %v1152
    %v1156 = vadd.f32 %v1144, %v1152
    %v1157 = vadd.f32 %v1145, %v1152
    %v1158 = vadd.f32 %v1146, %v1152
    %v1159 = vadd.f32 %v1147, %v1152
    %v1160 = vadd.f32 %v1148, %v1152
    %v1161 = vmax.f32 %v1153, 0.0
    %v1162 = vmax.f32 %v1154, 0.0
    %v1163 = vmax.f32 %v1155, 0.0
    %v1164 = vmax.f32 %v1156, 0.0
    %v1165 = vmax.f32 %v1157, 0.0
    %v1166 = vmax.f32 %v1158, 0.0
    %v1167 = vmax.f32 %v1159, 0.0
    %v1168 = vmax.f32 %v1160, 0.0
    %1177 = vrot.lane.b32.xlu0 %v1161, 8
    %v1178 = vpop.permute.xlu0 %1177
    %1179 = vrot.lane.b32.xlu0 %v1162, 8
    %v1180 = vpop.permute.xlu0 %1179
    %1181 = vrot.lane.b32.xlu0 %v1163, 8
    %v1182 = vpop.permute.xlu0 %1181
    %1183 = vrot.lane.b32.xlu0 %v1164, 8
    %v1184 = vpop.permute.xlu0 %1183
    %1185 = vrot.lane.b32.xlu0 %v1165, 8
    %v1186 = vpop.permute.xlu0 %1185
    %1187 = vrot.lane.b32.xlu0 %v1166, 8
    %v1188 = vpop.permute.xlu0 %1187
    %1189 = vrot.lane.b32.xlu0 %v1167, 8
    %v1190 = vpop.permute.xlu0 %1189
    %1191 = vrot.lane.b32.xlu0 %v1168, 8
    %v1192 = vpop.permute.xlu0 %1191
    %v1201 = vsel %vm105, 0.0, %v1178
    %v1202 = vsel %vm105, 0.0, %v1180
    %v1203 = vsel %vm105, 0.0, %v1182
    %v1204 = vsel %vm105, 0.0, %v1184
    %v1205 = vsel %vm105, 0.0, %v1186
    %v1206 = vsel %vm105, 0.0, %v1188
    %v1207 = vsel %vm105, 0.0, %v1190
    %v1208 = vsel %vm105, 0.0, %v1192
    %v1209 = vsel %vm114, %v1201, 0.0
    %v1210 = vsel %vm114, %v1202, 0.0
    %v1211 = vsel %vm114, %v1203, 0.0
    %v1212 = vsel %vm114, %v1204, 0.0
    %v1213 = vsel %vm114, %v1205, 0.0
    %v1214 = vsel %vm114, %v1206, 0.0
    %v1215 = vsel %vm114, %v1207, 0.0
    %v1216 = vsel %vm114, %v1208, 0.0
    %1217 = vst.msk [vmem:[%s123 + $0x1] sm:$0xff] %vm37, %v1209
    %1218 = vst.msk [vmem:[%s123 + $0x11] sm:$0xff] %vm37, %v1210
    %1219 = vst.msk [vmem:[%s123 + $0x21] sm:$0xff] %vm37, %v1211
    %1220 = vst.msk [vmem:[%s123 + $0x31] sm:$0xff] %vm37, %v1212
    %1221 = vst.msk [vmem:[%s123 + $0x61] sm:$0xff] %vm37, %v1213
    %1222 = vst.msk [vmem:[%s123 + $0x71] sm:$0xff] %vm37, %v1214
    %1223 = vst.msk [vmem:[%s123 + $0x81] sm:$0xff] %vm37, %v1215
    %1224 = vst.msk [vmem:[%s123 + $0x91] sm:$0xff] %vm37, %v1216
    %v1225 = vld [vmem:[#allocation2] sm:$0xff]
    %v1226 = vld [vmem:[#allocation2 + $0x10] sm:$0xff]
    %v1227 = vld [vmem:[#allocation2 + $0x20] sm:$0xff]
    %v1228 = vld [vmem:[#allocation2 + $0x30] sm:$0xff]
    %v1229 = vld [vmem:[#allocation2 + $0x60] sm:$0xff]
    %v1230 = vld [vmem:[#allocation2 + $0x70] sm:$0xff]
    %v1231 = vld [vmem:[#allocation2 + $0x80] sm:$0xff]
    %v1232 = vld [vmem:[#allocation2 + $0x90] sm:$0xff]
    %v1233 = vld [vmem:[#allocation2 + $0x1] sm:$0xff]
    %v1234 = vld [vmem:[#allocation2 + $0x11] sm:$0xff]
    %v1235 = vld [vmem:[#allocation2 + $0x21] sm:$0xff]
    %v1236 = vld [vmem:[#allocation2 + $0x31] sm:$0xff]
    %v1237 = vld [vmem:[#allocation2 + $0x61] sm:$0xff]
    %v1238 = vld [vmem:[#allocation2 + $0x71] sm:$0xff]
    %v1239 = vld [vmem:[#allocation2 + $0x81] sm:$0xff]
    %v1240 = vld [vmem:[#allocation2 + $0x91] sm:$0xff]
    %v1241 = vld [vmem:[#allocation2 + $0x2] sm:$0xff]
    %v1242 = vld [vmem:[#allocation2 + $0x12] sm:$0xff]
    %v1243 = vld [vmem:[#allocation2 + $0x22] sm:$0xff]
    %v1244 = vld [vmem:[#allocation2 + $0x32] sm:$0xff]
    %v1245 = vld [vmem:[#allocation2 + $0x62] sm:$0xff]
    %v1246 = vld [vmem:[#allocation2 + $0x72] sm:$0xff]
    %v1247 = vld [vmem:[#allocation2 + $0x82] sm:$0xff]
    %v1248 = vld [vmem:[#allocation2 + $0x92] sm:$0xff]
    %v1249 = vld [vmem:[%s123] sm:$0xff]
    %v1250 = vld [vmem:[%s123 + $0x10] sm:$0xff]
    %v1251 = vld [vmem:[%s123 + $0x20] sm:$0xff]
    %v1252 = vld [vmem:[%s123 + $0x30] sm:$0xff]
    %v1253 = vld [vmem:[%s123 + $0x60] sm:$0xff]
    %v1254 = vld [vmem:[%s123 + $0x70] sm:$0xff]
    %v1255 = vld [vmem:[%s123 + $0x80] sm:$0xff]
    %v1256 = vld [vmem:[%s123 + $0x90] sm:$0xff]
    %v1257 = vld [vmem:[%s123 + $0x1] sm:$0xff]
    %v1258 = vld [vmem:[%s123 + $0x11] sm:$0xff]
    %v1259 = vld [vmem:[%s123 + $0x21] sm:$0xff]
    %v1260 = vld [vmem:[%s123 + $0x31] sm:$0xff]
    %v1261 = vld [vmem:[%s123 + $0x61] sm:$0xff]
    %v1262 = vld [vmem:[%s123 + $0x71] sm:$0xff]
    %v1263 = vld [vmem:[%s123 + $0x81] sm:$0xff]
    %v1264 = vld [vmem:[%s123 + $0x91] sm:$0xff]
    %v1265 = vld [vmem:[%s123 + $0x2] sm:$0xff]
    %v1266 = vld [vmem:[%s123 + $0x12] sm:$0xff]
    %v1267 = vld [vmem:[%s123 + $0x22] sm:$0xff]
    %v1268 = vld [vmem:[%s123 + $0x32] sm:$0xff]
    %v1269 = vld [vmem:[%s123 + $0x62] sm:$0xff]
    %v1270 = vld [vmem:[%s123 + $0x72] sm:$0xff]
    %v1271 = vld [vmem:[%s123 + $0x82] sm:$0xff]
    %v1272 = vld [vmem:[%s123 + $0x92] sm:$0xff]
    %v1273 = vld [vmem:[%s180] sm:$0xff]
    %v1274 = vld [vmem:[%s180 + $0x10] sm:$0xff]
    %v1275 = vld [vmem:[%s180 + $0x20] sm:$0xff]
    %v1276 = vld [vmem:[%s180 + $0x30] sm:$0xff]
    %v1277 = vld [vmem:[%s180 + $0x60] sm:$0xff]
    %v1278 = vld [vmem:[%s180 + $0x70] sm:$0xff]
    %v1279 = vld [vmem:[%s180 + $0x80] sm:$0xff]
    %v1280 = vld [vmem:[%s180 + $0x90] sm:$0xff]
    %v1281 = vld [vmem:[%s180 + $0x1] sm:$0xff]
    %v1282 = vld [vmem:[%s180 + $0x11] sm:$0xff]
    %v1283 = vld [vmem:[%s180 + $0x21] sm:$0xff]
    %v1284 = vld [vmem:[%s180 + $0x31] sm:$0xff]
    %v1285 = vld [vmem:[%s180 + $0x61] sm:$0xff]
    %v1286 = vld [vmem:[%s180 + $0x71] sm:$0xff]
    %v1287 = vld [vmem:[%s180 + $0x81] sm:$0xff]
    %v1288 = vld [vmem:[%s180 + $0x91] sm:$0xff]
    %v1289 = vld [vmem:[%s180 + $0x2] sm:$0xff]
    %v1290 = vld [vmem:[%s180 + $0x12] sm:$0xff]
    %v1291 = vld [vmem:[%s180 + $0x22] sm:$0xff]
    %v1292 = vld [vmem:[%s180 + $0x32] sm:$0xff]
    %v1293 = vld [vmem:[%s180 + $0x62] sm:$0xff]
    %v1294 = vld [vmem:[%s180 + $0x72] sm:$0xff]
    %v1295 = vld [vmem:[%s180 + $0x82] sm:$0xff]
    %v1296 = vld [vmem:[%s180 + $0x92] sm:$0xff]
    %1305 = vrot.lane.b32.xlu0 %v1233, 80
    %v1306 = vpop.permute.xlu0 %1305
    %1307 = vrot.lane.b32.xlu0 %v1234, 80
    %v1308 = vpop.permute.xlu0 %1307
    %1309 = vrot.lane.b32.xlu0 %v1235, 80
    %v1310 = vpop.permute.xlu0 %1309
    %1311 = vrot.lane.b32.xlu0 %v1236, 80
    %v1312 = vpop.permute.xlu0 %1311
    %1313 = vrot.lane.b32.xlu0 %v1237, 80
    %v1314 = vpop.permute.xlu0 %1313
    %1315 = vrot.lane.b32.xlu0 %v1238, 80
    %v1316 = vpop.permute.xlu0 %1315
    %1317 = vrot.lane.b32.xlu0 %v1239, 80
    %v1318 = vpop.permute.xlu0 %1317
    %1319 = vrot.lane.b32.xlu0 %v1240, 80
    %v1320 = vpop.permute.xlu0 %1319
    %1337 = vrot.lane.b32.xlu0 %v1241, 32
    %v1338 = vpop.permute.xlu0 %1337
    %1339 = vrot.lane.b32.xlu0 %v1242, 32
    %v1340 = vpop.permute.xlu0 %1339
    %1341 = vrot.lane.b32.xlu0 %v1243, 32
    %v1342 = vpop.permute.xlu0 %1341
    %1343 = vrot.lane.b32.xlu0 %v1244, 32
    %v1344 = vpop.permute.xlu0 %1343
    %1345 = vrot.lane.b32.xlu0 %v1245, 32
    %v1346 = vpop.permute.xlu0 %1345
    %1347 = vrot.lane.b32.xlu0 %v1246, 32
    %v1348 = vpop.permute.xlu0 %1347
    %1349 = vrot.lane.b32.xlu0 %v1247, 32
    %v1350 = vpop.permute.xlu0 %1349
    %1351 = vrot.lane.b32.xlu0 %v1248, 32
    %v1352 = vpop.permute.xlu0 %1351
    %1369 = vrot.lane.b32.xlu0 %v1249, 112
    %v1370 = vpop.permute.xlu0 %1369
    %1371 = vrot.lane.b32.xlu0 %v1250, 112
    %v1372 = vpop.permute.xlu0 %1371
    %1373 = vrot.lane.b32.xlu0 %v1251, 112
    %v1374 = vpop.permute.xlu0 %1373
    %1375 = vrot.lane.b32.xlu0 %v1252, 112
    %v1376 = vpop.permute.xlu0 %1375
    %1377 = vrot.lane.b32.xlu0 %v1253, 112
    %v1378 = vpop.permute.xlu0 %1377
    %1379 = vrot.lane.b32.xlu0 %v1254, 112
    %v1380 = vpop.permute.xlu0 %1379
    %1381 = vrot.lane.b32.xlu0 %v1255, 112
    %v1382 = vpop.permute.xlu0 %1381
    %1383 = vrot.lane.b32.xlu0 %v1256, 112
    %v1384 = vpop.permute.xlu0 %1383
    %1401 = vrot.lane.b32.xlu0 %v1257, 64
    %v1402 = vpop.permute.xlu0 %1401
    %1403 = vrot.lane.b32.xlu0 %v1258, 64
    %v1404 = vpop.permute.xlu0 %1403
    %1405 = vrot.lane.b32.xlu0 %v1259, 64
    %v1406 = vpop.permute.xlu0 %1405
    %1407 = vrot.lane.b32.xlu0 %v1260, 64
    %v1408 = vpop.permute.xlu0 %1407
    %1409 = vrot.lane.b32.xlu0 %v1261, 64
    %v1410 = vpop.permute.xlu0 %1409
    %1411 = vrot.lane.b32.xlu0 %v1262, 64
    %v1412 = vpop.permute.xlu0 %1411
    %1413 = vrot.lane.b32.xlu0 %v1263, 64
    %v1414 = vpop.permute.xlu0 %1413
    %1415 = vrot.lane.b32.xlu0 %v1264, 64
    %v1416 = vpop.permute.xlu0 %1415
    %1433 = vrot.lane.b32.xlu0 %v1265, 16
    %v1434 = vpop.permute.xlu0 %1433
    %1435 = vrot.lane.b32.xlu0 %v1266, 16
    %v1436 = vpop.permute.xlu0 %1435
    %1437 = vrot.lane.b32.xlu0 %v1267, 16
    %v1438 = vpop.permute.xlu0 %1437
    %1439 = vrot.lane.b32.xlu0 %v1268, 16
    %v1440 = vpop.permute.xlu0 %1439
    %1441 = vrot.lane.b32.xlu0 %v1269, 16
    %v1442 = vpop.permute.xlu0 %1441
    %1443 = vrot.lane.b32.xlu0 %v1270, 16
    %v1444 = vpop.permute.xlu0 %1443
    %1445 = vrot.lane.b32.xlu0 %v1271, 16
    %v1446 = vpop.permute.xlu0 %1445
    %1447 = vrot.lane.b32.xlu0 %v1272, 16
    %v1448 = vpop.permute.xlu0 %1447
    %1465 = vrot.lane.b32.xlu0 %v1273, 96
    %v1466 = vpop.permute.xlu0 %1465
    %1467 = vrot.lane.b32.xlu0 %v1274, 96
    %v1468 = vpop.permute.xlu0 %1467
    %1469 = vrot.lane.b32.xlu0 %v1275, 96
    %v1470 = vpop.permute.xlu0 %1469
    %1471 = vrot.lane.b32.xlu0 %v1276, 96
    %v1472 = vpop.permute.xlu0 %1471
    %1473 = vrot.lane.b32.xlu0 %v1277, 96
    %v1474 = vpop.permute.xlu0 %1473
    %1475 = vrot.lane.b32.xlu0 %v1278, 96
    %v1476 = vpop.permute.xlu0 %1475
    %1477 = vrot.lane.b32.xlu0 %v1279, 96
    %v1478 = vpop.permute.xlu0 %1477
    %1479 = vrot.lane.b32.xlu0 %v1280, 96
    %v1480 = vpop.permute.xlu0 %1479
    %1497 = vrot.lane.b32.xlu0 %v1281, 48
    %v1498 = vpop.permute.xlu0 %1497
    %1499 = vrot.lane.b32.xlu0 %v1282, 48
    %v1500 = vpop.permute.xlu0 %1499
    %1501 = vrot.lane.b32.xlu0 %v1283, 48
    %v1502 = vpop.permute.xlu0 %1501
    %1503 = vrot.lane.b32.xlu0 %v1284, 48
    %v1504 = vpop.permute.xlu0 %1503
    %1505 = vrot.lane.b32.xlu0 %v1285, 48
    %v1506 = vpop.permute.xlu0 %1505
    %1507 = vrot.lane.b32.xlu0 %v1286, 48
    %v1508 = vpop.permute.xlu0 %1507
    %1509 = vrot.lane.b32.xlu0 %v1287, 48
    %v1510 = vpop.permute.xlu0 %1509
    %1511 = vrot.lane.b32.xlu0 %v1288, 48
    %v1512 = vpop.permute.xlu0 %1511
    %v1521 = vsel %vm37, %v1225, %v1306
    %v1522 = vsel %vm37, %v1226, %v1308
    %v1523 = vsel %vm37, %v1227, %v1310
    %v1524 = vsel %vm37, %v1228, %v1312
    %v1525 = vsel %vm37, %v1229, %v1314
    %v1526 = vsel %vm37, %v1230, %v1316
    %v1527 = vsel %vm37, %v1231, %v1318
    %v1528 = vsel %vm37, %v1232, %v1320
    %v1529 = vsel %vm437, %v1306, %v1338
    %v1530 = vsel %vm437, %v1308, %v1340
    %v1531 = vsel %vm437, %v1310, %v1342
    %v1532 = vsel %vm437, %v1312, %v1344
    %v1533 = vsel %vm437, %v1314, %v1346
    %v1534 = vsel %vm437, %v1316, %v1348
    %v1535 = vsel %vm437, %v1318, %v1350
    %v1536 = vsel %vm437, %v1320, %v1352
    %v1537 = vsel %vm446, %v1529, %v1370
    %v1538 = vsel %vm446, %v1530, %v1372
    %v1539 = vsel %vm446, %v1531, %v1374
    %v1540 = vsel %vm446, %v1532, %v1376
    %v1541 = vsel %vm446, %v1533, %v1378
    %v1542 = vsel %vm446, %v1534, %v1380
    %v1543 = vsel %vm446, %v1535, %v1382
    %v1544 = vsel %vm446, %v1536, %v1384
    %v1545 = vsel %vm455, %v1370, %v1402
    %v1546 = vsel %vm455, %v1372, %v1404
    %v1547 = vsel %vm455, %v1374, %v1406
    %v1548 = vsel %vm455, %v1376, %v1408
    %v1549 = vsel %vm455, %v1378, %v1410
    %v1550 = vsel %vm455, %v1380, %v1412
    %v1551 = vsel %vm455, %v1382, %v1414
    %v1552 = vsel %vm455, %v1384, %v1416
    %v1553 = vsel %vm464, %v1402, %v1434
    %v1554 = vsel %vm464, %v1404, %v1436
    %v1555 = vsel %vm464, %v1406, %v1438
    %v1556 = vsel %vm464, %v1408, %v1440
    %v1557 = vsel %vm464, %v1410, %v1442
    %v1558 = vsel %vm464, %v1412, %v1444
    %v1559 = vsel %vm464, %v1414, %v1446
    %v1560 = vsel %vm464, %v1416, %v1448
    %v1561 = vsel %vm473, %v1553, %v1466
    %v1562 = vsel %vm473, %v1554, %v1468
    %v1563 = vsel %vm473, %v1555, %v1470
    %v1564 = vsel %vm473, %v1556, %v1472
    %v1565 = vsel %vm473, %v1557, %v1474
    %v1566 = vsel %vm473, %v1558, %v1476
    %v1567 = vsel %vm473, %v1559, %v1478
    %v1568 = vsel %vm473, %v1560, %v1480
    %v1569 = vsel %vm482, %v1466, %v1498
    %v1570 = vsel %vm482, %v1468, %v1500
    %v1571 = vsel %vm482, %v1470, %v1502
    %v1572 = vsel %vm482, %v1472, %v1504
    %v1573 = vsel %vm482, %v1474, %v1506
    %v1574 = vsel %vm482, %v1476, %v1508
    %v1575 = vsel %vm482, %v1478, %v1510
    %v1576 = vsel %vm482, %v1480, %v1512
    %v1577 = vld [vmem:[%s2] sm:$0xff]
    %v1578 = vld [vmem:[%s2 + $0x8] sm:$0xff]
    %v1579 = vld [vmem:[%s2 + $0x10] sm:$0xff]
    %v1580 = vld [vmem:[%s2 + $0x18] sm:$0xff]
    %v1581 = vld [vmem:[%s2 + $0x20] sm:$0xff]
    %v1582 = vld [vmem:[%s2 + $0x28] sm:$0xff]
    %v1583 = vld [vmem:[%s2 + $0x30] sm:$0xff]
    %v1584 = vld [vmem:[%s2 + $0x38] sm:$0xff]
    %v1585 = vld [vmem:[%s2 + $0x40] sm:$0xff]
    %v1586 = vld [vmem:[%s2 + $0x48] sm:$0xff]
    %v1587 = vld [vmem:[%s2 + $0x50] sm:$0xff]
    %v1588 = vld [vmem:[%s2 + $0x58] sm:$0xff]
    %v1589 = vld [vmem:[%s2 + $0x60] sm:$0xff]
    %v1590 = vld [vmem:[%s2 + $0x68] sm:$0xff]
    %v1591 = vld [vmem:[%s2 + $0x70] sm:$0xff]
    %v1592 = vld [vmem:[%s2 + $0x78] sm:$0xff]
    %v1593 = vld [vmem:[%s2 + $0x80] sm:$0xff]
    %v1594 = vld [vmem:[%s2 + $0x88] sm:$0xff]
    %v1595 = vld [vmem:[%s2 + $0x90] sm:$0xff]
    %v1596 = vld [vmem:[%s2 + $0x98] sm:$0xff]
    %v1597 = vld [vmem:[%s2 + $0xa0] sm:$0xff]
    %v1598 = vld [vmem:[%s2 + $0xa8] sm:$0xff]
    %v1599 = vld [vmem:[%s2 + $0xb0] sm:$0xff]
    %v1600 = vld [vmem:[%s2 + $0xb8] sm:$0xff]
    %v1601 = vld [vmem:[%s2 + $0xc0] sm:$0xff]
    %v1602 = vld [vmem:[%s2 + $0xc8] sm:$0xff]
    %v1603 = vld [vmem:[%s2 + $0xd0] sm:$0xff]
    %v1604 = vld [vmem:[%s2 + $0xd8] sm:$0xff]
    %v1605 = vld [vmem:[%s2 + $0xe0] sm:$0xff]
    %v1606 = vld [vmem:[%s2 + $0xe8] sm:$0xff]
    %v1607 = vld [vmem:[%s2 + $0xf0] sm:$0xff]
    %v1608 = vld [vmem:[%s2 + $0xf8] sm:$0xff]
    %v1609 = vld [vmem:[%s2 + $0x100] sm:$0xff]
    %v1610 = vld [vmem:[%s2 + $0x108] sm:$0xff]
    %v1611 = vld [vmem:[%s2 + $0x110] sm:$0xff]
    %v1612 = vld [vmem:[%s2 + $0x118] sm:$0xff]
    %v1613 = vld [vmem:[%s2 + $0x120] sm:$0xff]
    %v1614 = vld [vmem:[%s2 + $0x128] sm:$0xff]
    %v1615 = vld [vmem:[%s2 + $0x130] sm:$0xff]
    %v1616 = vld [vmem:[%s2 + $0x138] sm:$0xff]
    %v1617 = vld [vmem:[%s2 + $0x140] sm:$0xff]
    %v1618 = vld [vmem:[%s2 + $0x148] sm:$0xff]
    %v1619 = vld [vmem:[%s2 + $0x150] sm:$0xff]
    %v1620 = vld [vmem:[%s2 + $0x158] sm:$0xff]
    %v1621 = vld [vmem:[%s2 + $0x160] sm:$0xff]
    %v1622 = vld [vmem:[%s2 + $0x168] sm:$0xff]
    %v1623 = vld [vmem:[%s2 + $0x170] sm:$0xff]
    %v1624 = vld [vmem:[%s2 + $0x178] sm:$0xff]
    %v1625 = vld [vmem:[%s2 + $0x180] sm:$0xff]
    %v1626 = vld [vmem:[%s2 + $0x188] sm:$0xff]
    %v1627 = vld [vmem:[%s2 + $0x190] sm:$0xff]
    %v1628 = vld [vmem:[%s2 + $0x198] sm:$0xff]
    %v1629 = vld [vmem:[%s2 + $0x1a0] sm:$0xff]
    %v1630 = vld [vmem:[%s2 + $0x1a8] sm:$0xff]
    %v1631 = vld [vmem:[%s2 + $0x1b0] sm:$0xff]
    %v1632 = vld [vmem:[%s2 + $0x1b8] sm:$0xff]
    %v1633 = vld [vmem:[%s2 + $0x1c0] sm:$0xff]
    %v1634 = vld [vmem:[%s2 + $0x1c8] sm:$0xff]
    %v1635 = vld [vmem:[%s2 + $0x1d0] sm:$0xff]
    %v1636 = vld [vmem:[%s2 + $0x1d8] sm:$0xff]
    %v1637 = vld [vmem:[%s2 + $0x1e0] sm:$0xff]
    %v1638 = vld [vmem:[%s2 + $0x1e8] sm:$0xff]
    %v1639 = vld [vmem:[%s2 + $0x1f0] sm:$0xff]
    %v1640 = vld [vmem:[%s2 + $0x1f8] sm:$0xff]
    %v1641 = vld [vmem:[%s2 + $0x200] sm:$0xff]
    %v1642 = vld [vmem:[%s2 + $0x208] sm:$0xff]
    %v1643 = vld [vmem:[%s2 + $0x210] sm:$0xff]
    %v1644 = vld [vmem:[%s2 + $0x218] sm:$0xff]
    %v1645 = vld [vmem:[%s2 + $0x220] sm:$0xff]
    %v1646 = vld [vmem:[%s2 + $0x228] sm:$0xff]
    %v1647 = vld [vmem:[%s2 + $0x230] sm:$0xff]
    %v1648 = vld [vmem:[%s2 + $0x238] sm:$0xff]
    %v1649 = vld [vmem:[%s2 + $0x240] sm:$0xff]
    %v1650 = vld [vmem:[%s2 + $0x248] sm:$0xff]
    %v1651 = vld [vmem:[%s2 + $0x250] sm:$0xff]
    %v1652 = vld [vmem:[%s2 + $0x258] sm:$0xff]
    %v1653 = vld [vmem:[%s2 + $0x260] sm:$0xff]
    %v1654 = vld [vmem:[%s2 + $0x268] sm:$0xff]
    %v1655 = vld [vmem:[%s2 + $0x270] sm:$0xff]
    %v1656 = vld [vmem:[%s2 + $0x278] sm:$0xff]
    %v1657 = vld [vmem:[%s2 + $0x280] sm:$0xff]
    %v1658 = vld [vmem:[%s2 + $0x288] sm:$0xff]
    %v1659 = vld [vmem:[%s2 + $0x290] sm:$0xff]
    %v1660 = vld [vmem:[%s2 + $0x298] sm:$0xff]
    %v1661 = vld [vmem:[%s2 + $0x2a0] sm:$0xff]
    %v1662 = vld [vmem:[%s2 + $0x2a8] sm:$0xff]
    %v1663 = vld [vmem:[%s2 + $0x2b0] sm:$0xff]
    %v1664 = vld [vmem:[%s2 + $0x2b8] sm:$0xff]
    %v1665 = vld [vmem:[%s2 + $0x2c0] sm:$0xff]
    %v1666 = vld [vmem:[%s2 + $0x2c8] sm:$0xff]
    %v1668 = vsel %vm37, %v1289, 0
    %v1671 = vsel %vm37, %v1290, 0
    %v1674 = vsel %vm37, %v1291, 0
    %v1677 = vsel %vm37, %v1292, 0
    %v1680 = vsel %vm37, %v1293, 0
    %v1683 = vsel %vm37, %v1294, 0
    %v1686 = vsel %vm37, %v1295, 0
    %v1689 = vsel %vm37, %v1296, 0
    %1691 = vmatprep.subr.mxu0 0.0
    %1692 = vmatpush1.msra.mxu0 %v1577
    %1693 = vmatprep.subr.mxu0 0.0
    %1694 = vmatpush1.msra.mxu0 %v1578
    %1695 = vmatprep.subr.mxu0 0.0
    %1696 = vmatpush1.msra.mxu0 %v1579
    %1697 = vmatprep.subr.mxu0 0.0
    %1698 = vmatpush1.msra.mxu0 %v1580
    %1699 = vmatprep.subr.mxu0 0.0
    %1700 = vmatpush1.msra.mxu0 %v1581
    %1701 = vmatprep.subr.mxu0 0.0
    %1702 = vmatpush1.msra.mxu0 %v1582
    %1703 = vmatprep.subr.mxu0 0.0
    %1704 = vmatpush1.msra.mxu0 %v1583
    %1705 = vmatprep.subr.mxu0 0.0
    %1706 = vmatpush1.msra.mxu0 %v1584
    %1707 = vmatprep.subr.mxu0 0.0
    %1708 = vmatpush1.msra.mxu0 %v1585
    %1709 = vmatprep.subr.mxu0 0.0
    %1710 = vmatpush1.msra.mxu0 %v1586
    %1711 = vmatprep.subr.mxu0 0.0
    %1712 = vmatpush1.msra.mxu0 %v1587
    %1713 = vmatprep.subr.mxu0 0.0
    %1714 = vmatpush1.msra.mxu0 %v1588
    %1715 = vmatprep.subr.mxu0 0.0
    %1716 = vmatpush1.msra.mxu0 %v1589
    %1717 = vmatprep.subr.mxu0 0.0
    %1718 = vmatpush1.msra.mxu0 %v1590
    %1719 = vmatprep.subr.mxu0 0.0
    %1720 = vmatpush1.msra.mxu0 %v1591
    %1721 = vmatprep.subr.mxu0 0.0
    %1722 = vmatpush1.msra.mxu0 %v1592
    %1723 = vmatprep.subr.mxu0 0.0
    %1724 = vmatpush1.msra.mxu0 %v1593
    %1725 = vmatprep.subr.mxu0 0.0
    %1726 = vmatpush1.msra.mxu0 %v1594
    %1727 = vmatprep.subr.mxu0 0.0
    %1728 = vmatpush1.msra.mxu0 %v1595
    %1729 = vmatprep.subr.mxu0 0.0
    %1730 = vmatpush1.msra.mxu0 %v1596
    %1731 = vmatprep.subr.mxu0 0.0
    %1732 = vmatpush1.msra.mxu0 %v1597
    %1733 = vmatprep.subr.mxu0 0.0
    %1734 = vmatpush1.msra.mxu0 %v1598
    %1735 = vmatprep.subr.mxu0 0.0
    %1736 = vmatpush1.msra.mxu0 %v1599
    %1737 = vmatprep.subr.mxu0 0.0
    %1738 = vmatpush1.msra.mxu0 %v1600
    %1739 = vmatprep.subr.mxu0 0.0
    %1740 = vmatpush1.msra.mxu0 %v1601
    %1741 = vmatprep.subr.mxu0 0.0
    %1742 = vmatpush1.msra.mxu0 %v1602
    %1743 = vmatprep.subr.mxu0 0.0
    %1744 = vmatpush1.msra.mxu0 %v1603
    %1745 = vmatprep.subr.mxu0 0.0
    %1746 = vmatpush1.msra.mxu0 %v1604
    %1747 = vmatprep.subr.mxu0 0.0
    %1748 = vmatpush1.msra.mxu0 %v1605
    %1749 = vmatprep.subr.mxu0 0.0
    %1750 = vmatpush1.msra.mxu0 %v1606
    %1751 = vmatprep.subr.mxu0 0.0
    %1752 = vmatpush1.msra.mxu0 %v1607
    %1753 = vmatprep.subr.mxu0 0.0
    %1754 = vmatpush1.msra.mxu0 %v1608
    %1755 = vmatprep.mubr.f32.mxu0 %v1537
    %1756 = vmatmul.mubr.f32.gmra.mrb[0].mxu0 %v1521
    %v1757 = vpop.f32.mrb[0].mxu0
    %v1758 = vadd.f32 0.0, %v1757
    %v1759 = vpop.f32.mrb[0].mxu0
    %1760 = vmatprep.mubr.f32.mxu0 %v1538
    %1761 = vmatmul.mubr.f32.gmra.mrb[0].mxu0 %v1522
    %v1762 = vpop.f32.mrb[0].mxu0
    %v1763 = vadd.f32 0.0, %v1762
    %v1764 = vpop.f32.mrb[0].mxu0
    %1765 = vmatprep.mubr.f32.mxu0 %v1539
    %1766 = vmatmul.mubr.f32.gmra.mrb[0].mxu0 %v1523
    %v1767 = vpop.f32.mrb[0].mxu0
    %v1768 = vadd.f32 0.0, %v1767
    %v1769 = vpop.f32.mrb[0].mxu0
    %1770 = vmatprep.mubr.f32.mxu0 %v1540
    %1771 = vmatmul.mubr.f32.gmra.mrb[0].mxu0 %v1524
    %v1772 = vpop.f32.mrb[0].mxu0
    %v1773 = vadd.f32 0.0, %v1772
    %v1774 = vpop.f32.mrb[0].mxu0
    %1775 = vmatprep.mubr.f32.mxu0 %v1541
    %1776 = vmatmul.mubr.f32.gmra.mrb[0].mxu0 %v1525
    %v1777 = vpop.f32.mrb[0].mxu0
    %v1778 = vadd.f32 0.0, %v1777
    %v1779 = vpop.f32.mrb[0].mxu0
    %1780 = vmatprep.mubr.f32.mxu0 %v1542
    %1781 = vmatmul.mubr.f32.gmra.mrb[0].mxu0 %v1526
    %v1782 = vpop.f32.mrb[0].mxu0
    %v1783 = vadd.f32 0.0, %v1782
    %v1784 = vpop.f32.mrb[0].mxu0
    %1785 = vmatprep.mubr.f32.mxu0 %v1543
    %1786 = vmatmul.mubr.f32.gmra.mrb[0].mxu0 %v1527
    %v1787 = vpop.f32.mrb[0].mxu0
    %v1788 = vadd.f32 0.0, %v1787
    %v1789 = vpop.f32.mrb[0].mxu0
    %1790 = vmatprep.mubr.f32.mxu0 %v1544
    %1791 = vmatmul.mubr.f32.gmra.mrb[0].mxu0 %v1528
    %v1792 = vpop.f32.mrb[0].mxu0
    %v1793 = vadd.f32 0.0, %v1792
    %v1794 = vpop.f32.mrb[0].mxu0
    %1795 = vdwg.mxu0
    %1796 = vmatprep.subr.mxu0 0.0
    %1797 = vmatpush1.msra.mxu0 %v1609
    %1798 = vmatprep.subr.mxu0 0.0
    %1799 = vmatpush1.msra.mxu0 %v1610
    %1800 = vmatprep.subr.mxu0 0.0
    %1801 = vmatpush1.msra.mxu0 %v1611
    %1802 = vmatprep.subr.mxu0 0.0
    %1803 = vmatpush1.msra.mxu0 %v1612
    %1804 = vmatprep.subr.mxu0 0.0
    %1805 = vmatpush1.msra.mxu0 %v1613
    %1806 = vmatprep.subr.mxu0 0.0
    %1807 = vmatpush1.msra.mxu0 %v1614
    %1808 = vmatprep.subr.mxu0 0.0
    %1809 = vmatpush1.msra.mxu0 %v1615
    %1810 = vmatprep.subr.mxu0 0.0
    %1811 = vmatpush1.msra.mxu0 %v1616
    %1812 = vmatprep.subr.mxu0 0.0
    %1813 = vmatpush1.msra.mxu0 %v1617
    %1814 = vmatprep.subr.mxu0 0.0
    %1815 = vmatpush1.msra.mxu0 %v1618
    %1816 = vmatprep.subr.mxu0 0.0
    %1817 = vmatpush1.msra.mxu0 %v1619
    %1818 = vmatprep.subr.mxu0 0.0
    %1819 = vmatpush1.msra.mxu0 %v1620
    %1820 = vmatprep.subr.mxu0 0.0
    %1821 = vmatpush1.msra.mxu0 %v1621
    %1822 = vmatprep.subr.mxu0 0.0
    %1823 = vmatpush1.msra.mxu0 %v1622
    %1824 = vmatprep.subr.mxu0 0.0
    %1825 = vmatpush1.msra.mxu0 %v1623
    %1826 = vmatprep.subr.mxu0 0.0
    %1827 = vmatpush1.msra.mxu0 %v1624
    %1828 = vmatprep.subr.mxu0 0.0
    %1829 = vmatpush1.msra.mxu0 %v1625
    %1830 = vmatprep.subr.mxu0 0.0
    %1831 = vmatpush1.msra.mxu0 %v1626
    %1832 = vmatprep.subr.mxu0 0.0
    %1833 = vmatpush1.msra.mxu0 %v1627
    %1834 = vmatprep.subr.mxu0 0.0
    %1835 = vmatpush1.msra.mxu0 %v1628
    %1836 = vmatprep.subr.mxu0 0.0
    %1837 = vmatpush1.msra.mxu0 %v1629
    %1838 = vmatprep.subr.mxu0 0.0
    %1839 = vmatpush1.msra.mxu0 %v1630
    %1840 = vmatprep.subr.mxu0 0.0
    %1841 = vmatpush1.msra.mxu0 %v1631
    %1842 = vmatprep.subr.mxu0 0.0
    %1843 = vmatpush1.msra.mxu0 %v1632
    %1844 = vmatprep.subr.mxu0 0.0
    %1845 = vmatpush1.msra.mxu0 %v1633
    %1846 = vmatprep.subr.mxu0 0.0
    %1847 = vmatpush1.msra.mxu0 %v1634
    %1848 = vmatprep.subr.mxu0 0.0
    %1849 = vmatpush1.msra.mxu0 %v1635
    %1850 = vmatprep.subr.mxu0 0.0
    %1851 = vmatpush1.msra.mxu0 %v1636
    %1852 = vmatprep.subr.mxu0 0.0
    %1853 = vmatpush1.msra.mxu0 %v1637
    %1854 = vmatprep.subr.mxu0 0.0
    %1855 = vmatpush1.msra.mxu0 %v1638
    %1856 = vmatprep.subr.mxu0 0.0
    %1857 = vmatpush1.msra.mxu0 %v1639
    %1858 = vmatprep.subr.mxu0 0.0
    %1859 = vmatpush1.msra.mxu0 %v1640
    %1860 = vmatprep.mubr.f32.mxu0 %v1561
    %1861 = vmatmul.mubr.f32.gmra.mrb[0].mxu0 %v1545
    %v1862 = vpop.f32.mrb[0].mxu0
    %v1863 = vadd.f32 %v1758, %v1862
    %v1864 = vpop.f32.mrb[0].mxu0
    %1865 = vmatprep.mubr.f32.mxu0 %v1562
    %1866 = vmatmul.mubr.f32.gmra.mrb[0].mxu0 %v1546
    %v1867 = vpop.f32.mrb[0].mxu0
    %v1868 = vadd.f32 %v1763, %v1867
    %v1869 = vpop.f32.mrb[0].mxu0
    %1870 = vmatprep.mubr.f32.mxu0 %v1563
    %1871 = vmatmul.mubr.f32.gmra.mrb[0].mxu0 %v1547
    %v1872 = vpop.f32.mrb[0].mxu0
    %v1873 = vadd.f32 %v1768, %v1872
    %v1874 = vpop.f32.mrb[0].mxu0
    %1875 = vmatprep.mubr.f32.mxu0 %v1564
    %1876 = vmatmul.mubr.f32.gmra.mrb[0].mxu0 %v1548
    %v1877 = vpop.f32.mrb[0].mxu0
    %v1878 = vadd.f32 %v1773, %v1877
    %v1879 = vpop.f32.mrb[0].mxu0
    %1880 = vmatprep.mubr.f32.mxu0 %v1565
    %1881 = vmatmul.mubr.f32.gmra.mrb[0].mxu0 %v1549
    %v1882 = vpop.f32.mrb[0].mxu0
    %v1883 = vadd.f32 %v1778, %v1882
    %v1884 = vpop.f32.mrb[0].mxu0
    %1885 = vmatprep.mubr.f32.mxu0 %v1566
    %1886 = vmatmul.mubr.f32.gmra.mrb[0].mxu0 %v1550
    %v1887 = vpop.f32.mrb[0].mxu0
    %v1888 = vadd.f32 %v1783, %v1887
    %v1889 = vpop.f32.mrb[0].mxu0
    %1890 = vmatprep.mubr.f32.mxu0 %v1567
    %1891 = vmatmul.mubr.f32.gmra.mrb[0].mxu0 %v1551
    %v1892 = vpop.f32.mrb[0].mxu0
    %v1893 = vadd.f32 %v1788, %v1892
    %v1894 = vpop.f32.mrb[0].mxu0
    %1895 = vmatprep.mubr.f32.mxu0 %v1568
    %1896 = vmatmul.mubr.f32.gmra.mrb[0].mxu0 %v1552
    %v1897 = vpop.f32.mrb[0].mxu0
    %v1898 = vadd.f32 %v1793, %v1897
    %v1899 = vpop.f32.mrb[0].mxu0
    %1900 = vdwg.mxu0
    %1901 = vmatprep.subr.mxu0 0.0
    %1902 = vmatpush1.msra.mxu0 %v1641
    %1903 = vmatprep.subr.mxu0 0.0
    %1904 = vmatpush1.msra.mxu0 %v1642
    %1905 = vmatprep.subr.mxu0 0.0
    %1906 = vmatpush1.msra.mxu0 %v1643
    %1907 = vmatprep.subr.mxu0 0.0
    %1908 = vmatpush1.msra.mxu0 %v1644
    %1909 = vmatprep.subr.mxu0 0.0
    %1910 = vmatpush1.msra.mxu0 %v1645
    %1911 = vmatprep.subr.mxu0 0.0
    %1912 = vmatpush1.msra.mxu0 %v1646
    %1913 = vmatprep.subr.mxu0 0.0
    %1914 = vmatpush1.msra.mxu0 %v1647
    %1915 = vmatprep.subr.mxu0 0.0
    %1916 = vmatpush1.msra.mxu0 %v1648
    %1917 = vmatprep.subr.mxu0 0.0
    %1918 = vmatpush1.msra.mxu0 %v1649
    %1919 = vmatprep.subr.mxu0 0.0
    %1920 = vmatpush1.msra.mxu0 %v1650
    %1921 = vmatprep.subr.mxu0 0.0
    %1922 = vmatpush1.msra.mxu0 %v1651
    %1923 = vmatprep.subr.mxu0 0.0
    %1924 = vmatpush1.msra.mxu0 %v1652
    %1925 = vmatprep.subr.mxu0 0.0
    %1926 = vmatpush1.msra.mxu0 %v1653
    %1927 = vmatprep.subr.mxu0 0.0
    %1928 = vmatpush1.msra.mxu0 %v1654
    %1929 = vmatprep.subr.mxu0 0.0
    %1930 = vmatpush1.msra.mxu0 %v1655
    %1931 = vmatprep.subr.mxu0 0.0
    %1932 = vmatpush1.msra.mxu0 %v1656
    %1933 = vmatprep.subr.mxu0 0.0
    %1934 = vmatpush1.msra.mxu0 %v1657
    %1935 = vmatprep.subr.mxu0 0.0
    %1936 = vmatpush1.msra.mxu0 %v1658
    %1937 = vmatprep.subr.mxu0 0.0
    %1938 = vmatpush1.msra.mxu0 %v1659
    %1939 = vmatprep.subr.mxu0 0.0
    %1940 = vmatpush1.msra.mxu0 %v1660
    %1941 = vmatprep.subr.mxu0 0.0
    %1942 = vmatpush1.msra.mxu0 %v1661
    %1943 = vmatprep.subr.mxu0 0.0
    %1944 = vmatpush1.msra.mxu0 %v1662
    %1945 = vmatprep.subr.mxu0 0.0
    %1946 = vmatpush1.msra.mxu0 %v1663
    %1947 = vmatprep.subr.mxu0 0.0
    %1948 = vmatpush1.msra.mxu0 %v1664
    %1949 = vmatprep.subr.mxu0 0.0
    %1950 = vmatpush1.msra.mxu0 %v1665
    %1951 = vmatprep.subr.mxu0 0.0
    %1952 = vmatpush1.msra.mxu0 %v1666
    %1953 = vmatprep.subr.mxu0 0.0
    %1954 = vmatpush1.msra.mxu0 0.0
    %1955 = vmatprep.subr.mxu0 0.0
    %1956 = vmatpush1.msra.mxu0 0.0
    %1957 = vmatprep.subr.mxu0 0.0
    %1958 = vmatpush1.msra.mxu0 0.0
    %1959 = vmatprep.subr.mxu0 0.0
    %1960 = vmatpush1.msra.mxu0 0.0
    %1961 = vmatprep.subr.mxu0 0.0
    %1962 = vmatpush1.msra.mxu0 0.0
    %1963 = vmatprep.subr.mxu0 0.0
    %1964 = vmatpush1.msra.mxu0 0.0
    %1965 = vmatprep.mubr.f32.mxu0 %v1668
    %1966 = vmatmul.mubr.f32.gmra.mrb[0].mxu0 %v1569
    %v1967 = vpop.f32.mrb[0].mxu0
    %v1968 = vadd.f32 %v1863, %v1967
    %v1969 = vpop.f32.mrb[0].mxu0
    %1970 = vmatprep.mubr.f32.mxu0 %v1671
    %1971 = vmatmul.mubr.f32.gmra.mrb[0].mxu0 %v1570
    %v1972 = vpop.f32.mrb[0].mxu0
    %v1973 = vadd.f32 %v1868, %v1972
    %v1974 = vpop.f32.mrb[0].mxu0
    %1975 = vmatprep.mubr.f32.mxu0 %v1674
    %1976 = vmatmul.mubr.f32.gmra.mrb[0].mxu0 %v1571
    %v1977 = vpop.f32.mrb[0].mxu0
    %v1978 = vadd.f32 %v1873, %v1977
    %v1979 = vpop.f32.mrb[0].mxu0
    %1980 = vmatprep.mubr.f32.mxu0 %v1677
    %1981 = vmatmul.mubr.f32.gmra.mrb[0].mxu0 %v1572
    %v1982 = vpop.f32.mrb[0].mxu0
    %v1983 = vadd.f32 %v1878, %v1982
    %v1984 = vpop.f32.mrb[0].mxu0
    %1985 = vmatprep.mubr.f32.mxu0 %v1680
    %1986 = vmatmul.mubr.f32.gmra.mrb[0].mxu0 %v1573
    %v1987 = vpop.f32.mrb[0].mxu0
    %v1988 = vadd.f32 %v1883, %v1987
    %v1989 = vpop.f32.mrb[0].mxu0
    %1990 = vmatprep.mubr.f32.mxu0 %v1683
    %1991 = vmatmul.mubr.f32.gmra.mrb[0].mxu0 %v1574
    %v1992 = vpop.f32.mrb[0].mxu0
    %v1993 = vadd.f32 %v1888, %v1992
    %v1994 = vpop.f32.mrb[0].mxu0
    %1995 = vmatprep.mubr.f32.mxu0 %v1686
    %1996 = vmatmul.mubr.f32.gmra.mrb[0].mxu0 %v1575
    %v1997 = vpop.f32.mrb[0].mxu0
    %v1998 = vadd.f32 %v1893, %v1997
    %v1999 = vpop.f32.mrb[0].mxu0
    %2000 = vmatprep.mubr.f32.mxu0 %v1689
    %2001 = vmatmul.mubr.f32.gmra.mrb[0].mxu0 %v1576
    %v2002 = vpop.f32.mrb[0].mxu0
    %v2003 = vadd.f32 %v1898, %v2002
    %v2004 = vpop.f32.mrb[0].mxu0
    %2005 = vdwg.mxu0
    %v2006 = vld [vmem:[%s3 + $0x2] sm:$0x1]
    %v2007 = vld [vmem:[%s3 + $0x3] sm:$0x1]
    %v2008 = vsel %vm455, %v1968, 0.0
    %v2009 = vsel %vm455, %v1973, 0.0
    %v2010 = vadd.f32 %v2008, %v2009
    %v2011 = vsel %vm455, %v1978, 0.0
    %v2012 = vadd.f32 %v2010, %v2011
    %v2013 = vsel %vm455, %v1983, 0.0
    %v2014 = vadd.f32 %v2012, %v2013
    %v2015 = vsel %vm455, %v1988, 0.0
    %v2016 = vadd.f32 %v2014, %v2015
    %v2017 = vsel %vm455, %v1993, 0.0
    %v2018 = vadd.f32 %v2016, %v2017
    %v2019 = vsel %vm455, %v1998, 0.0
    %v2020 = vadd.f32 %v2018, %v2019
    %v2021 = vsel %vm455, %v2003, 0.0
    %v2022 = vadd.f32 %v2020, %v2021
    %v2023 = vrot.slane %v2022, 4
    %v2024 = vadd.f32 %v2022, %v2023
    %v2025 = vrot.slane %v2024, 2
    %v2026 = vadd.f32 %v2024, %v2025
    %v2027 = vrot.slane %v2026, 1
    %v2028 = vadd.f32 %v2026, %v2027
    %v2029 = vmul.f32 %v1968, %v1968
    %v2030 = vmul.f32 %v1973, %v1973
    %v2031 = vmul.f32 %v1978, %v1978
    %v2032 = vmul.f32 %v1983, %v1983
    %v2033 = vmul.f32 %v1988, %v1988
    %v2034 = vmul.f32 %v1993, %v1993
    %v2035 = vmul.f32 %v1998, %v1998
    %v2036 = vmul.f32 %v2003, %v2003
    %v2037 = vsel %vm455, %v2029, 0.0
    %v2038 = vsel %vm455, %v2030, 0.0
    %v2039 = vadd.f32 %v2037, %v2038
    %v2040 = vsel %vm455, %v2031, 0.0
    %v2041 = vadd.f32 %v2039, %v2040
    %v2042 = vsel %vm455, %v2032, 0.0
    %v2043 = vadd.f32 %v2041, %v2042
    %v2044 = vsel %vm455, %v2033, 0.0
    %v2045 = vadd.f32 %v2043, %v2044
    %v2046 = vsel %vm455, %v2034, 0.0
    %v2047 = vadd.f32 %v2045, %v2046
    %v2048 = vsel %vm455, %v2035, 0.0
    %v2049 = vadd.f32 %v2047, %v2048
    %v2050 = vsel %vm455, %v2036, 0.0
    %v2051 = vadd.f32 %v2049, %v2050
    %v2052 = vrot.slane %v2051, 4
    %v2053 = vadd.f32 %v2051, %v2052
    %v2054 = vrot.slane %v2053, 2
    %v2055 = vadd.f32 %v2053, %v2054
    %v2056 = vrot.slane %v2055, 1
    %v2057 = vadd.f32 %v2055, %v2056
    %v2059 = vsel %vm455, %v2028, 0
    %2061 = vmatprep.subr.mxu0 0.0
    %2062 = vmatpush1.msra.mxu0 %v29
    %2063 = vmatprep.subr.mxu0 0.0
    %2064 = vmatpush1.msra.mxu0 %v30
    %2065 = vmatprep.subr.mxu0 0.0
    %2066 = vmatpush1.msra.mxu0 %v31
    %2067 = vmatprep.subr.mxu0 0.0
    %2068 = vmatpush1.msra.mxu0 %v32
    %2069 = vmatprep.subr.mxu0 0.0
    %2070 = vmatpush1.msra.mxu0 %v33
    %2071 = vmatprep.subr.mxu0 0.0
    %2072 = vmatpush1.msra.mxu0 %v34
    %2073 = vmatprep.subr.mxu0 0.0
    %2074 = vmatpush1.msra.mxu0 %v35
    %2075 = vmatprep.subr.mxu0 0.0
    %2076 = vmatpush1.msra.mxu0 %v36
    %2077 = vmatprep.subr.mxu0 0.0
    %2078 = vmatpush1.msra.mxu0 0.0
    %2079 = vmatprep.subr.mxu0 0.0
    %2080 = vmatpush1.msra.mxu0 0.0
    %2081 = vmatprep.subr.mxu0 0.0
    %2082 = vmatpush1.msra.mxu0 0.0
    %2083 = vmatprep.subr.mxu0 0.0
    %2084 = vmatpush1.msra.mxu0 0.0
    %2085 = vmatprep.subr.mxu0 0.0
    %2086 = vmatpush1.msra.mxu0 0.0
    %2087 = vmatprep.subr.mxu0 0.0
    %2088 = vmatpush1.msra.mxu0 0.0
    %2089 = vmatprep.subr.mxu0 0.0
    %2090 = vmatpush1.msra.mxu0 0.0
    %2091 = vmatprep.subr.mxu0 0.0
    %2092 = vmatpush1.msra.mxu0 0.0
    %2093 = vmatprep.subr.mxu0 0.0
    %2094 = vmatpush1.msra.mxu0 0.0
    %2095 = vmatprep.subr.mxu0 0.0
    %2096 = vmatpush1.msra.mxu0 0.0
    %2097 = vmatprep.subr.mxu0 0.0
    %2098 = vmatpush1.msra.mxu0 0.0
    %2099 = vmatprep.subr.mxu0 0.0
    %2100 = vmatpush1.msra.mxu0 0.0
    %2101 = vmatprep.subr.mxu0 0.0
    %2102 = vmatpush1.msra.mxu0 0.0
    %2103 = vmatprep.subr.mxu0 0.0
    %2104 = vmatpush1.msra.mxu0 0.0
    %2105 = vmatprep.subr.mxu0 0.0
    %2106 = vmatpush1.msra.mxu0 0.0
    %2107 = vmatprep.subr.mxu0 0.0
    %2108 = vmatpush1.msra.mxu0 0.0
    %2109 = vmatprep.subr.mxu0 0.0
    %2110 = vmatpush1.msra.mxu0 0.0
    %2111 = vmatprep.subr.mxu0 0.0
    %2112 = vmatpush1.msra.mxu0 0.0
    %2113 = vmatprep.subr.mxu0 0.0
    %2114 = vmatpush1.msra.mxu0 0.0
    %2115 = vmatprep.subr.mxu0 0.0
    %2116 = vmatpush1.msra.mxu0 0.0
    %2117 = vmatprep.subr.mxu0 0.0
    %2118 = vmatpush1.msra.mxu0 0.0
    %2119 = vmatprep.subr.mxu0 0.0
    %2120 = vmatpush1.msra.mxu0 0.0
    %2121 = vmatprep.subr.mxu0 0.0
    %2122 = vmatpush1.msra.mxu0 0.0
    %2123 = vmatprep.subr.mxu0 0.0
    %2124 = vmatpush1.msra.mxu0 0.0
    %2125 = vmatprep.mubr.f32.mxu0 0.0
    %2126 = vmatmul.mubr.f32.gmra.mrb[0].mxu0 %v2059
    %v2127 = vpop.f32.mrb[0].mxu0
    %v2128 = vadd.f32 0.0, %v2127
    %v2129 = vpop.f32.mrb[0].mxu0
    %2130 = vdwg.mxu0
    %v2131 = vmul.f32 %v2128, 0.001953125
    %v2133 = vsel %vm455, %v2057, 0
    %2135 = vmatprep.subr.mxu0 0.0
    %2136 = vmatpush1.msra.mxu0 %v29
    %2137 = vmatprep.subr.mxu0 0.0
    %2138 = vmatpush1.msra.mxu0 %v30
    %2139 = vmatprep.subr.mxu0 0.0
    %2140 = vmatpush1.msra.mxu0 %v31
    %2141 = vmatprep.subr.mxu0 0.0
    %2142 = vmatpush1.msra.mxu0 %v32
    %2143 = vmatprep.subr.mxu0 0.0
    %2144 = vmatpush1.msra.mxu0 %v33
    %2145 = vmatprep.subr.mxu0 0.0
    %2146 = vmatpush1.msra.mxu0 %v34
    %2147 = vmatprep.subr.mxu0 0.0
    %2148 = vmatpush1.msra.mxu0 %v35
    %2149 = vmatprep.subr.mxu0 0.0
    %2150 = vmatpush1.msra.mxu0 %v36
    %2151 = vmatprep.subr.mxu0 0.0
    %2152 = vmatpush1.msra.mxu0 0.0
    %2153 = vmatprep.subr.mxu0 0.0
    %2154 = vmatpush1.msra.mxu0 0.0
    %2155 = vmatprep.subr.mxu0 0.0
    %2156 = vmatpush1.msra.mxu0 0.0
    %2157 = vmatprep.subr.mxu0 0.0
    %2158 = vmatpush1.msra.mxu0 0.0
    %2159 = vmatprep.subr.mxu0 0.0
    %2160 = vmatpush1.msra.mxu0 0.0
    %2161 = vmatprep.subr.mxu0 0.0
    %2162 = vmatpush1.msra.mxu0 0.0
    %2163 = vmatprep.subr.mxu0 0.0
    %2164 = vmatpush1.msra.mxu0 0.0
    %2165 = vmatprep.subr.mxu0 0.0
    %2166 = vmatpush1.msra.mxu0 0.0
    %2167 = vmatprep.subr.mxu0 0.0
    %2168 = vmatpush1.msra.mxu0 0.0
    %2169 = vmatprep.subr.mxu0 0.0
    %2170 = vmatpush1.msra.mxu0 0.0
    %2171 = vmatprep.subr.mxu0 0.0
    %2172 = vmatpush1.msra.mxu0 0.0
    %2173 = vmatprep.subr.mxu0 0.0
    %2174 = vmatpush1.msra.mxu0 0.0
    %2175 = vmatprep.subr.mxu0 0.0
    %2176 = vmatpush1.msra.mxu0 0.0
    %2177 = vmatprep.subr.mxu0 0.0
    %2178 = vmatpush1.msra.mxu0 0.0
    %2179 = vmatprep.subr.mxu0 0.0
    %2180 = vmatpush1.msra.mxu0 0.0
    %2181 = vmatprep.subr.mxu0 0.0
    %2182 = vmatpush1.msra.mxu0 0.0
    %2183 = vmatprep.subr.mxu0 0.0
    %2184 = vmatpush1.msra.mxu0 0.0
    %2185 = vmatprep.subr.mxu0 0.0
    %2186 = vmatpush1.msra.mxu0 0.0
    %2187 = vmatprep.subr.mxu0 0.0
    %2188 = vmatpush1.msra.mxu0 0.0
    %2189 = vmatprep.subr.mxu0 0.0
    %2190 = vmatpush1.msra.mxu0 0.0
    %2191 = vmatprep.subr.mxu0 0.0
    %2192 = vmatpush1.msra.mxu0 0.0
    %2193 = vmatprep.subr.mxu0 0.0
    %2194 = vmatpush1.msra.mxu0 0.0
    %2195 = vmatprep.subr.mxu0 0.0
    %2196 = vmatpush1.msra.mxu0 0.0
    %2197 = vmatprep.subr.mxu0 0.0
    %2198 = vmatpush1.msra.mxu0 0.0
    %2199 = vmatprep.mubr.f32.mxu0 0.0
    %2200 = vmatmul.mubr.f32.gmra.mrb[0].mxu0 %v2133
    %v2201 = vpop.f32.mrb[0].mxu0
    %v2202 = vadd.f32 0.0, %v2201
    %v2203 = vpop.f32.mrb[0].mxu0
    %2204 = vdwg.mxu0
    %v2205 = vmul.f32 %v2202, 0.001953125
    %v2206 = vmul.f32 %v2131, %v2131
    %v2207 = vsub.f32 %v2205, %v2206
    %v2208 = vlaneseq
    %v2209 = vshrl.u32 %v2208, 7
    %v2210 = vsub.s32 0, %v2209
    %v2211 = vrot.slane %v2131, %v2210
    %v2212 = vsub.f32 %v1968, %v2211
    %v2213 = vsub.f32 %v1973, %v2211
    %v2214 = vsub.f32 %v1978, %v2211
    %v2215 = vsub.f32 %v1983, %v2211
    %v2216 = vsub.f32 %v1988, %v2211
    %v2217 = vsub.f32 %v1993, %v2211
    %v2218 = vsub.f32 %v1998, %v2211
    %v2219 = vsub.f32 %v2003, %v2211
    %v2220 = vadd.f32 %v2207, 1e-05
    %v2221 = vrsqrt.pop %v2220
    %v2222 = vmul.f32 %v2221, %v2006
    %v2223 = vlaneseq
    %v2224 = vshrl.u32 %v2223, 7
    %v2225 = vsub.s32 0, %v2224
    %v2226 = vrot.slane %v2222, %v2225
    %v2227 = vmul.f32 %v2212, %v2226
    %v2228 = vmul.f32 %v2213, %v2226
    %v2229 = vmul.f32 %v2214, %v2226
    %v2230 = vmul.f32 %v2215, %v2226
    %v2231 = vmul.f32 %v2216, %v2226
    %v2232 = vmul.f32 %v2217, %v2226
    %v2233 = vmul.f32 %v2218, %v2226
    %v2234 = vmul.f32 %v2219, %v2226
    %v2235 = vlaneseq
    %v2236 = vshrl.u32 %v2235, 7
    %v2237 = vsub.s32 0, %v2236
    %v2238 = vrot.slane %v2007, %v2237
    %v2239 = vadd.f32 %v2227, %v2238
    %v2240 = vadd.f32 %v2228, %v2238
    %v2241 = vadd.f32 %v2229, %v2238
    %v2242 = vadd.f32 %v2230, %v2238
    %v2243 = vadd.f32 %v2231, %v2238
    %v2244 = vadd.f32 %v2232, %v2238
    %v2245 = vadd.f32 %v2233, %v2238
    %v2246 = vadd.f32 %v2234, %v2238
    %v2247 = vadd.f32 %v2239, %v21
    %v2248 = vadd.f32 %v2240, %v22
    %v2249 = vadd.f32 %v2241, %v23
    %v2250 = vadd.f32 %v2242, %v24
    %v2251 = vadd.f32 %v2243, %v25
    %v2252 = vadd.f32 %v2244, %v26
    %v2253 = vadd.f32 %v2245, %v27
    %v2254 = vadd.f32 %v2246, %v28
    %v2255 = vmax.f32 %v2247, 0.0
    %v2256 = vmax.f32 %v2248, 0.0
    %v2257 = vmax.f32 %v2249, 0.0
    %v2258 = vmax.f32 %v2250, 0.0
    %v2259 = vmax.f32 %v2251, 0.0
    %v2260 = vmax.f32 %v2252, 0.0
    %v2261 = vmax.f32 %v2253, 0.0
    %v2262 = vmax.f32 %v2254, 0.0
    %2263 = vst.msk [vmem:[#allocation3] sm:$0xff] %vm455, %v2255
    %2264 = vst.msk [vmem:[#allocation3 + $0x8] sm:$0xff] %vm455, %v2256
    %2265 = vst.msk [vmem:[#allocation3 + $0x10] sm:$0xff] %vm455, %v2257
    %2266 = vst.msk [vmem:[#allocation3 + $0x18] sm:$0xff] %vm455, %v2258
    %2267 = vst.msk [vmem:[#allocation3 + $0x20] sm:$0xff] %vm455, %v2259
    %2268 = vst.msk [vmem:[#allocation3 + $0x28] sm:$0xff] %vm455, %v2260
    %2269 = vst.msk [vmem:[#allocation3 + $0x30] sm:$0xff] %vm455, %v2261
    %2270 = vst.msk [vmem:[#allocation3 + $0x38] sm:$0xff] %vm455, %v2262
    // Predicated region
    $region22: #{tpu_custom_call.1} parent=1 // pred_check
      _
    $region23: #{tpu_custom_call.1} parent=1 // pred_check_branch
      %2272 = sbr.rel (0) target = $region25
    $region24: #{tpu_custom_call.1} parent=1 // pred_region
      %s2274 = ssub.s32 1024, 1024
      %2275 = vsyncadd [#allocation4], %s2274
      %s2276 = sshll.u32 [#allocation3], 4
      %s2277 = int_to_ptr.vmem [resolvable:$true] %s2276
      %2282 = dma.vmem_to_hbm [thread:$0]  %s2277, 1024, %s5, [#allocation4], 128, 128, 8
    $region25: #{tpu_custom_call.1} parent=1 // pred_fallthru
      _
    // Predicated region
    $region26: #{tpu_custom_call.1} parent=1 // pred_check
      _
    $region27: #{tpu_custom_call.1} parent=1 // pred_check_branch
      %2284 = sbr.rel (0) target = $region29
    $region28: #{tpu_custom_call.1} parent=1 // pred_region
      %2285 = dma.done [#allocation4], 1024
    $region29: #{tpu_custom_call.1} parent=1 // pred_fallthru
      _
    %2286 = vsyncpa [#allocation4], 1

</llo_original>
